<compile_context>
chip_gen: v7x
topology: tpu7x:2x2x1
jax: 0.10.0
libtpu: 0.0.40
codegen_flags: <defaults>
</compile_context>

<pallas_src>
import functools

import jax
import jax.numpy as jnp
import numpy as np
from jax.experimental import pallas as pl
from jax.experimental.pallas import tpu as pltpu

_LANE = 128
_SUB = 8


# ------------------------------ planning -------------------------------------

def _round_up(x, m):
    return (x + m - 1) // m * m


def _tpu_vmem_bytes():
    try:
        return int(pltpu.get_tpu_info().vmem_capacity_bytes)
    except Exception:
        return 64 << 20            # conservative fallback: v7x per-TensorCore VMEM


def _plan(B, S, H, L, compute_dtype):
    """Generation-aware tiling plan.  Tile sizes for the two kernels are decoupled."""
    item = int(jnp.dtype(compute_dtype).itemsize)
    phys = _tpu_vmem_bytes()
    budget = max(phys * 3 // 4, 16 << 20)      # headroom for compiler-internal scratch
    vmem_cap = phys * 7 // 8

    Hp = _round_up(max(H, 1), _LANE)           # pad hidden dim -> full MXU rows/cols
    S_pad = _round_up(max(S, 1), _LANE)        # lane-dense (TB, S_pad) energy/output

    s_chunk = min(S_pad, 256)                  # in-kernel S chunk, bounds temporaries
    while S_pad % s_chunk:
        s_chunk //= 2                          # S_pad % 128 == 0 -> terminates at >= 128

    # ---- attention-step batch tile (TB): footprint dominated by chunk temporaries ----
    per_b = (2 * S_pad * Hp * item             # enc / e_attn block (double-buffered)
             + 2 * L * Hp * item               # hidden block
             + 2 * S_pad * 4                   # f32 energy / output block
             + 2 * _LANE * 4                   # enc_len block (lane-padded)
             + s_chunk * Hp * (4 + 2 * item)   # per-chunk temporaries (f32 + 2x compute dtype)
             + s_chunk * 4)
    fixed = 2 * Hp * Hp * item + 8 * Hp * 4 + (2 << 20)
    tb_cap = max((budget - fixed) // per_b, _SUB)
    TB = int(min(max(tb_cap // _SUB * _SUB, _SUB), 512))
    B8 = _round_up(B, _SUB)
    TB = min(TB, B8)
    if B8 // TB < 2 and B8 >= 2 * _SUB:        # >= 2 parallel grid steps for v7x's 2 TCs
        TB = max(_SUB, (B8 // 2) // _SUB * _SUB)
    B_pad = _round_up(B, TB)
    nb = B_pad // TB
    need_step = TB * per_b + fixed
    vmem_step = int(min(max(need_step + (4 << 20), 32 << 20), vmem_cap))

    # ---- encoder-projection row tile (decoupled; mem-bound matmul -> big blocks) ----
    rows = B_pad * S_pad
    row_bytes = Hp * item
    tm_cap = max((budget - Hp * Hp * item - (2 << 20)) // (4 * row_bytes), _SUB)
    TM = _SUB
    t = _SUB
    while t <= rows:
        if rows % t == 0 and t <= tm_cap:
            TM = t
        t *= 2
    if rows // TM < 2 and TM >= 2 * _SUB and rows % (TM // 2) == 0:
        TM //= 2                               # keep >= 2 grid steps for v7x megacore
    n_row_tiles = rows // TM
    need_enc = 4 * TM * row_bytes + Hp * Hp * item
    vmem_enc = int(min(max(need_enc + (4 << 20), 32 << 20), vmem_cap))

    return dict(B=int(B), S=int(S), H=int(H), L=int(L),
                Hp=int(Hp), S_pad=int(S_pad), s_chunk=int(s_chunk),
                TB=int(TB), B_pad=int(B_pad), nb=int(nb),
                TM=int(TM), n_row_tiles=int(n_row_tiles),
                vmem_step=int(vmem_step), vmem_enc=int(vmem_enc))


# ------------------------------- kernels --------------------------------------

def _encoder_proj_kernel(enc_ref, we_ref, out_ref):
    """Pure matmul e_attn = enc @ We^T (bias folded into the step kernel's bias).
    enc_ref: (TM, Hp), we_ref: (Hp, Hp), out_ref: (TM, Hp)."""
    out_ref[...] = jnp.dot(enc_ref[...], we_ref[...],
                           preferred_element_type=jnp.float32).astype(out_ref.dtype)


def _attention_kernel(x_ref, hidden_ref, len_ref, we_ref, wh_ref, bias_ref,
                      wo_ref, bo_ref, out_ref, *, fuse_enc_proj, s_chunk, approx_recip):
    """Per-decode-step attention for one batch tile.

    x_ref     : (TB, S_pad, Hp)  raw encoder output (fuse_enc_proj=True) or precomputed e_attn
    hidden_ref: (L, TB, Hp)      decoder hidden state
    len_ref   : (TB, 1) int32    valid sequence lengths
    we_ref    : (Hp, Hp)         We^T (only read on the fused path)
    wh_ref    : (Hp, Hp)         Wh^T
    bias_ref  : (1, Hp) f32      bh + be (encoder-proj bias folded in)
    wo_ref    : (1, Hp) f32      out-projection weights;  bo_ref: (1, 1) f32
    out_ref   : (TB, S_pad) f32  masked softmax weights (lane-dense)
    """
    L, TB, Hp = hidden_ref.shape
    S_pad = out_ref.shape[1]
    cdt = x_ref.dtype

    # (1) decoder-layer mean (== bmm with the [1/L]*L mask) + hidden_proj on the MXU.
    h_avg = jnp.sum(hidden_ref[...].astype(jnp.float32), axis=0) * (1.0 / L)        # (TB, Hp)
    h_attn = (jnp.dot(h_avg.astype(cdt), wh_ref[...],
                      preferred_element_type=jnp.float32) + bias_ref[...])           # (TB, Hp) f32
    h_attn = h_attn.astype(cdt)[:, None, :]                                          # (TB, 1, Hp)

    wo = wo_ref[...]                                                                  # (1, Hp) f32
    bo = bo_ref[...]                                                                  # (1, 1) f32
    we = we_ref[...] if fuse_enc_proj else None

    # (2) S-chunked energy: never materialize the full (TB, S_pad, Hp) f32 chain.
    def compute_chunk(s0):
        x = x_ref[:, pl.ds(s0, s_chunk), :]                                           # (TB, CH, Hp)
        if fuse_enc_proj:
            e = jnp.dot(x.reshape(TB * s_chunk, Hp), we,
                        preferred_element_type=jnp.float32)
            e = e.astype(cdt).reshape(TB, s_chunk, Hp)
        else:
            e = x
        res = jnp.tanh(e + h_attn)                                                    # cdt add/tanh
        energy = jnp.sum(res.astype(jnp.float32) * wo, axis=-1) + bo                  # (TB, CH) f32
        out_ref[:, pl.ds(s0, s_chunk)] = energy

    n_chunks = S_pad // s_chunk
    if n_chunks == 1:
        compute_chunk(0)
    else:
        def body(c, carry):
            compute_chunk(pl.multiple_of(c * s_chunk, s_chunk))
            return carry
        jax.lax.fori_loop(0, n_chunks, body, 0)

    # (3) masked per-row softmax over the first enc_len[b] positions (f32 throughout).
    energy = out_ref[...]
    pos = jax.lax.broadcasted_iota(jnp.int32, (TB, S_pad), 1)
    valid = pos < len_ref[...]
    masked = jnp.where(valid, energy, jnp.float32(-1e30))
    m = jnp.max(masked, axis=1, keepdims=True)
    p = jnp.where(valid, jnp.exp(masked - m), 0.0)
    denom = jnp.sum(p, axis=1, keepdims=True)
    denom = jnp.where(denom > 0.0, denom, 1.0)
    out_ref[...] = p * pl.reciprocal(denom, approx=approx_recip)


# ------------------------------- wrappers --------------------------------------

def init_linear(key, fan_in, fan_out):
    """PyTorch nn.Linear default init: U(-1/sqrt(fan_in), 1/sqrt(fan_in))."""
    k_w, k_b = jax.random.split(key)
    bound = 1.0 / np.sqrt(fan_in)
    w = jax.random.uniform(k_w, (fan_out, fan_in), jnp.float32, -bound, bound)
    b = jax.random.uniform(k_b, (fan_out,), jnp.float32, -bound, bound)
    return w, b


def _prep_weights(params, Hp, compute_dtype):
    """Pad weights to Hp (multiple of 128) and fold be into bh (bias' = bh + be)."""
    wh, bh = params["hidden_proj"]
    we, be = params["encoder_output_proj"]
    wo, bo = params["out"]
    H = wh.shape[0]
    padm = ((0, Hp - H), (0, Hp - H))
    padr = ((0, 0), (0, Hp - H))
    we_t = jnp.pad(we.T, padm).astype(compute_dtype)
    wh_t = jnp.pad(wh.T, padm).astype(compute_dtype)
    bias = jnp.pad((bh + be).reshape(1, H), padr).astype(jnp.float32)
    wo_row = jnp.pad(wo.reshape(1, H), padr).astype(jnp.float32)
    bo_11 = bo.reshape(1, 1).astype(jnp.float32)
    return we_t, wh_t, bias, wo_row, bo_11


def _attention_call(x, hid, len2, we_t, wh_t, bias, wo_row, bo_11, plan, *,
                    fuse_enc_proj, compute_dtype):
    TB, B_pad, S_pad, Hp = plan["TB"], plan["B_pad"], plan["S_pad"], plan["Hp"]
    nb, s_chunk, L = plan["nb"], plan["s_chunk"], hid.shape[0]
    approx = jnp.dtype(compute_dtype) != jnp.dtype(jnp.float32)
    kernel = functools.partial(_attention_kernel, fuse_enc_proj=fuse_enc_proj,
                               s_chunk=s_chunk, approx_recip=approx)
    return pl.pallas_call(
        kernel,
        out_shape=jax.ShapeDtypeStruct((B_pad, S_pad), jnp.float32),
        grid=(nb,),
        in_specs=[
            pl.BlockSpec((TB, S_pad, Hp), lambda i: (i, 0, 0)),   # enc or e_attn tile
            pl.BlockSpec((L, TB, Hp), lambda i: (0, i, 0)),       # hidden tile
            pl.BlockSpec((TB, 1), lambda i: (i, 0)),              # enc_len tile
            pl.BlockSpec((Hp, Hp), lambda i: (0, 0)),             # We^T (fused path only)
            pl.BlockSpec((Hp, Hp), lambda i: (0, 0)),             # Wh^T
            pl.BlockSpec((1, Hp), lambda i: (0, 0)),              # bh + be
            pl.BlockSpec((1, Hp), lambda i: (0, 0)),              # wo
            pl.BlockSpec((1, 1), lambda i: (0, 0)),               # bo
        ],
        out_specs=pl.BlockSpec((TB, S_pad), lambda i: (i, 0)),    # lane-dense output
        compiler_params=pltpu.CompilerParams(
            dimension_semantics=("parallel",),
            vmem_limit_bytes=plan["vmem_step"]),
    )(x, hid, len2, we_t, wh_t, bias, wo_row, bo_11)


def encode_encoder_output(params, encoder_output, *, decoder_layers,
                          compute_dtype=jnp.bfloat16):
    """Hidden-independent precompute for decode loops: e_attn = enc @ We^T (no bias; be is
    folded into the step bias).  Call once per sequence, reuse for every decode step.
    Returns (e_attn (B_pad, S_pad, Hp), plan)."""
    S, B, H = encoder_output.shape
    plan = _plan(B, S, H, decoder_layers, compute_dtype)
    B_pad, S_pad, Hp = plan["B_pad"], plan["S_pad"], plan["Hp"]
    TM, n_rows = plan["TM"], plan["n_row_tiles"]

    we, _ = params["encoder_output_proj"]
    we_t = jnp.pad(we.T, ((0, Hp - H), (0, Hp - H))).astype(compute_dtype)

    enc = jnp.transpose(encoder_output, (1, 0, 2)).astype(compute_dtype)     # (B, S, H)
    enc = jnp.pad(enc, ((0, B_pad - B), (0, S_pad - S), (0, Hp - H)))
    enc2d = enc.reshape(B_pad * S_pad, Hp)                                   # MXU-shaped LHS

    e_attn = pl.pallas_call(
        _encoder_proj_kernel,
        out_shape=jax.ShapeDtypeStruct((B_pad * S_pad, Hp), compute_dtype),
        grid=(n_rows,),
        in_specs=[
            pl.BlockSpec((TM, Hp), lambda i: (i, 0)),      # big row tiles (mem-bound matmul)
            pl.BlockSpec((Hp, Hp), lambda i: (0, 0)),      # We^T (untiled)
        ],
        out_specs=pl.BlockSpec((TM, Hp), lambda i: (i, 0)),
        compiler_params=pltpu.CompilerParams(
            dimension_semantics=("parallel",),
            vmem_limit_bytes=plan["vmem_enc"]),
    )(enc2d, we_t)
    return e_attn.reshape(B_pad, S_pad, Hp), plan


def attention_step(params, hidden, e_attn, enc_len, plan, *, compute_dtype=jnp.bfloat16):
    """Per-decode-step attention using precomputed e_attn.  Returns (B, S, 1) f32 weights."""
    L, B, H = hidden.shape
    B_pad, Hp = plan["B_pad"], plan["Hp"]
    we_t, wh_t, bias, wo_row, bo_11 = _prep_weights(params, Hp, compute_dtype)
    hid = jnp.pad(hidden.astype(compute_dtype), ((0, 0), (0, B_pad - B), (0, Hp - H)))
    len2 = jnp.pad(jnp.asarray(enc_len, jnp.int32), (0, B_pad - B)).reshape(B_pad, 1)
    out = _attention_call(e_attn, hid, len2, we_t, wh_t, bias, wo_row, bo_11, plan,
                          fuse_enc_proj=False, compute_dtype=compute_dtype)
    return out[:B, :plan["S"]][..., None]


def bahdanau_attention(params, hidden, encoder_output, enc_len, prev_attention=None,
                       *, compute_dtype=jnp.bfloat16):
    """Single-shot forward (encoder projection fused into the step kernel, no e_attn HBM
    round trip).  hidden: (L,B,H), encoder_output: (S,B,H), enc_len: (B,). Returns (B,S,1)."""
    del prev_attention  # unused by the PyTorch module's forward()
    L, B, H = hidden.shape
    S = encoder_output.shape[0]
    plan = _plan(B, S, H, L, compute_dtype)
    B_pad, S_pad, Hp = plan["B_pad"], plan["S_pad"], plan["Hp"]

    we_t, wh_t, bias, wo_row, bo_11 = _prep_weights(params, Hp, compute_dtype)
    enc = jnp.transpose(encoder_output, (1, 0, 2)).astype(compute_dtype)     # (B, S, H)
    enc = jnp.pad(enc, ((0, B_pad - B), (0, S_pad - S), (0, Hp - H)))
    hid = jnp.pad(hidden.astype(compute_dtype), ((0, 0), (0, B_pad - B), (0, Hp - H)))
    len2 = jnp.pad(jnp.asarray(enc_len, jnp.int32), (0, B_pad - B)).reshape(B_pad, 1)

    out = _attention_call(enc, hid, len2, we_t, wh_t, bias, wo_row, bo_11, plan,
                          fuse_enc_proj=True, compute_dtype=compute_dtype)
    return out[:B, :S][..., None]


# ------------------------------- reference -------------------------------------

def reference(params, hidden, encoder_output, enc_len):
    """Exact float64 numpy reference mirroring the PyTorch forward."""
    wh, bh = (np.asarray(a, np.float64) for a in params["hidden_proj"])
    we, be = (np.asarray(a, np.float64) for a in params["encoder_output_proj"])
    wo, bo = (np.asarray(a, np.float64) for a in params["out"])
    hidden = np.asarray(hidden, np.float64)
    enc = np.transpose(np.asarray(encoder_output, np.float64), (1, 0, 2))    # (B, S, H)
    B, S, _ = enc.shape
    h_avg = hidden.mean(axis=0)                                              # (B, H)
    h_attn = h_avg @ wh.T + bh
    e_attn = enc @ we.T + be
    res = np.tanh(e_attn + h_attn[:, None, :])
    energy = (res @ wo.T).squeeze(-1) + bo                                   # (B, S)
    out = np.zeros((B, S), np.float64)
    for i in range(B):
        le = int(np.asarray(enc_len)[i])
        if le > 0:
            ex = np.exp(energy[i, :le] - energy[i, :le].max())
            out[i, :le] = ex / ex.sum()
    return out[..., None]                                                    # (B, S, 1)


if __name__ == "__main__":
    B, S, H, L = 2, 8, 32, 2

    key = jax.random.PRNGKey(0)
    k_hp, k_ep, k_out, k_hid, k_hid2, k_enc = jax.random.split(key, 6)
    params = {
        "hidden_proj": init_linear(k_hp, H, H),
        "encoder_output_proj": init_linear(k_ep, H, H),
        "out": init_linear(k_out, H, 1),
    }

    hidden = jax.random.normal(k_hid, (L, B, H), jnp.float32)
    hidden2 = jax.random.normal(k_hid2, (L, B, H), jnp.float32)   # a second decode step
    encoder_output = jax.random.normal(k_enc, (S, B, H), jnp.float32)
    enc_len = jnp.array([8, 5], dtype=jnp.int32)
    prev_attention = None  # unused by the module's forward()

    ref1 = reference(params, hidden, encoder_output, enc_len)
    ref2 = reference(params, hidden2, encoder_output, enc_len)

    # single-shot fused path, f32 end-to-end
    out_f32 = bahdanau_attention(params, hidden, encoder_output, enc_len, prev_attention,
                                 compute_dtype=jnp.float32)
    out_f32 = jax.block_until_ready(out_f32)
    np.testing.assert_allclose(np.asarray(out_f32, np.float64), ref1, atol=5e-3, rtol=2e-2)

    # single-shot fused path, bf16 MXU/VPU inputs with f32 accumulation + f32 softmax
    out_bf16 = bahdanau_attention(params, hidden, encoder_output, enc_len, prev_attention,
                                  compute_dtype=jnp.bfloat16)
    out_bf16 = jax.block_until_ready(out_bf16)
    np.testing.assert_allclose(np.asarray(out_bf16, np.float64), ref1, atol=3e-2, rtol=1e-1)

    # decode-loop path: encoder projection precomputed ONCE, reused across decode steps
    e_attn, plan = encode_encoder_output(params, encoder_output, decoder_layers=L,
                                         compute_dtype=jnp.float32)
    for hid_t, ref_t in ((hidden, ref1), (hidden2, ref2)):
        w = attention_step(params, hid_t, e_attn, enc_len, plan, compute_dtype=jnp.float32)
        w = jax.block_until_ready(w)
        np.testing.assert_allclose(np.asarray(w, np.float64), ref_t, atol=5e-3, rtol=2e-2)

    print("KERNEL_OK")
</pallas_src>

<mosaic_0001>
module attributes {stable_mosaic.version = 11 : i64} {
  func.func @_attention_kernel(%arg0: i32, %arg1: memref<8x128x128xf32, #tpu.memory_space<vmem>>, %arg2: memref<2x8x128xf32, #tpu.memory_space<vmem>>, %arg3: memref<8x1xi32, #tpu.memory_space<vmem>>, %arg4: memref<128x128xf32, #tpu.memory_space<vmem>>, %arg5: memref<128x128xf32, #tpu.memory_space<vmem>>, %arg6: memref<1x128xf32, #tpu.memory_space<vmem>>, %arg7: memref<1x128xf32, #tpu.memory_space<vmem>>, %arg8: memref<1x1xf32, #tpu.memory_space<vmem>>, %arg9: memref<8x128xf32, #tpu.memory_space<vmem>>) attributes {dimension_semantics = [#tpu.dimension_semantics<parallel>], iteration_bounds = array<i64: 1>, scalar_prefetch = 0 : i64, scratch_operands = 0 : i64, tpu.core_type = #tpu.core_type<tc>, window_params = [{transform_indices = @transform_0, window_bounds = array<i64: 8, 128, 128>}, {transform_indices = @transform_1, window_bounds = array<i64: 2, 8, 128>}, {transform_indices = @transform_2, window_bounds = array<i64: 8, 1>}, {pipeline_mode = #tpu.pipeline_mode<synchronous>, transform_indices = @transform_3, window_bounds = array<i64: 128, 128>}, {pipeline_mode = #tpu.pipeline_mode<synchronous>, transform_indices = @transform_4, window_bounds = array<i64: 128, 128>}, {pipeline_mode = #tpu.pipeline_mode<synchronous>, transform_indices = @transform_5, window_bounds = array<i64: 1, 128>}, {pipeline_mode = #tpu.pipeline_mode<synchronous>, transform_indices = @transform_6, window_bounds = array<i64: 1, 128>}, {pipeline_mode = #tpu.pipeline_mode<synchronous>, transform_indices = @transform_7, window_bounds = array<i64: 1, 1>}, {transform_indices = @transform_8, window_bounds = array<i64: 8, 128>}]} {
    %c0 = arith.constant 0 : index
    %c0_0 = arith.constant 0 : index
    %c0_1 = arith.constant 0 : index
    %0 = vector.load %arg2[%c0, %c0_0, %c0_1] : memref<2x8x128xf32, #tpu.memory_space<vmem>>, vector<2x8x128xf32>
    %cst = arith.constant dense<0.000000e+00> : vector<8x128xf32>
    %1 = vector.multi_reduction <add>, %0, %cst [0] : vector<2x8x128xf32> to vector<8x128xf32>
    %cst_2 = arith.constant 5.000000e-01 : f32
    %2 = vector.broadcast %cst_2 : f32 to vector<8x128xf32>
    %3 = arith.mulf %1, %2 : vector<8x128xf32>
    %c0_3 = arith.constant 0 : index
    %c0_4 = arith.constant 0 : index
    %4 = vector.load %arg5[%c0_3, %c0_4] : memref<128x128xf32, #tpu.memory_space<vmem>>, vector<128x128xf32>
    %cst_5 = arith.constant dense<0.000000e+00> : vector<8x128xf32>
    %5 = tpu.matmul %3, %4, %cst_5 {dimension_numbers = #tpu.dot_dimension_numbers<[1], [0], [0], [1], [0, 0, 1, 1], [], []>} : vector<8x128xf32>, vector<128x128xf32>, vector<8x128xf32> -> vector<8x128xf32>
    %c0_6 = arith.constant 0 : index
    %c0_7 = arith.constant 0 : index
    %6 = vector.load %arg6[%c0_6, %c0_7] : memref<1x128xf32, #tpu.memory_space<vmem>>, vector<1x128xf32>
    %7 = vector.broadcast %6 : vector<1x128xf32> to vector<8x128xf32>
    %8 = arith.addf %5, %7 : vector<8x128xf32>
    %9 = vector.shape_cast %8 : vector<8x128xf32> to vector<8x1x128xf32>
    %c0_8 = arith.constant 0 : index
    %c0_9 = arith.constant 0 : index
    %10 = vector.load %arg7[%c0_8, %c0_9] : memref<1x128xf32, #tpu.memory_space<vmem>>, vector<1x128xf32>
    %c0_10 = arith.constant 0 : index
    %c0_11 = arith.constant 0 : index
    %11 = vector.load %arg8[%c0_10, %c0_11] : memref<1x1xf32, #tpu.memory_space<vmem>>, vector<1x1xf32>
    %c0_12 = arith.constant 0 : index
    %c0_13 = arith.constant 0 : index
    %12 = vector.load %arg4[%c0_12, %c0_13] : memref<128x128xf32, #tpu.memory_space<vmem>>, vector<128x128xf32>
    %c0_14 = arith.constant 0 : index
    %c0_15 = arith.constant 0 : index
    %c0_16 = arith.constant 0 : index
    %13 = vector.load %arg1[%c0_14, %c0_15, %c0_16] : memref<8x128x128xf32, #tpu.memory_space<vmem>>, vector<8x128x128xf32>
    %14 = vector.shape_cast %13 : vector<8x128x128xf32> to vector<1024x128xf32>
    %cst_17 = arith.constant dense<0.000000e+00> : vector<1024x128xf32>
    %15 = tpu.matmul %14, %12, %cst_17 {dimension_numbers = #tpu.dot_dimension_numbers<[1], [0], [0], [1], [0, 0, 1, 1], [], []>} : vector<1024x128xf32>, vector<128x128xf32>, vector<1024x128xf32> -> vector<1024x128xf32>
    %16 = vector.shape_cast %15 : vector<1024x128xf32> to vector<8x128x128xf32>
    %17 = vector.broadcast %9 : vector<8x1x128xf32> to vector<8x128x128xf32>
    %18 = arith.addf %16, %17 : vector<8x128x128xf32>
    %19 = math.tanh %18 : vector<8x128x128xf32>
    %20 = vector.shape_cast %10 : vector<1x128xf32> to vector<1x1x128xf32>
    %21 = vector.broadcast %20 : vector<1x1x128xf32> to vector<8x128x128xf32>
    %22 = arith.mulf %19, %21 : vector<8x128x128xf32>
    %cst_18 = arith.constant dense<0.000000e+00> : vector<8x128xf32>
    %23 = vector.multi_reduction <add>, %22, %cst_18 [2] : vector<8x128x128xf32> to vector<8x128xf32>
    %24 = vector.broadcast %11 : vector<1x1xf32> to vector<8x128xf32>
    %25 = arith.addf %23, %24 : vector<8x128xf32>
    %c0_19 = arith.constant 0 : index
    %c0_20 = arith.constant 0 : index
    %26 = vector.load %arg9[%c0_19, %c0_20] : memref<8x128xf32, #tpu.memory_space<vmem>>, vector<8x128xf32>
    tpu.vector_store %arg9[%c0_19, %c0_20], %25 {strides = array<i32>} : memref<8x128xf32, #tpu.memory_space<vmem>>, vector<8x128xf32>,
    %c0_21 = arith.constant 0 : index
    %c0_22 = arith.constant 0 : index
    %27 = vector.load %arg9[%c0_21, %c0_22] : memref<8x128xf32, #tpu.memory_space<vmem>>, vector<8x128xf32>
    %28 = tpu.iota {dimensions = array<i32: 1>} : vector<8x128xi32>
    %c0_23 = arith.constant 0 : index
    %c0_24 = arith.constant 0 : index
    %29 = vector.load %arg3[%c0_23, %c0_24] : memref<8x1xi32, #tpu.memory_space<vmem>>, vector<8x1xi32>
    %30 = vector.broadcast %29 : vector<8x1xi32> to vector<8x128xi32>
    %31 = arith.cmpi slt, %28, %30 : vector<8x128xi32>
    %cst_25 = arith.constant -1.000000e+30 : f32
    %32 = vector.broadcast %cst_25 : f32 to vector<8x128xf32>
    %33 = arith.select %31, %27, %32 : vector<8x128xi1>, vector<8x128xf32>
    %cst_26 = arith.constant dense<0xFF800000> : vector<8xf32>
    %34 = vector.multi_reduction <maximumf>, %33, %cst_26 [1] : vector<8x128xf32> to vector<8xf32>
    %35 = vector.shape_cast %34 : vector<8xf32> to vector<8x1xf32>
    %36 = vector.broadcast %35 : vector<8x1xf32> to vector<8x128xf32>
    %37 = arith.subf %33, %36 : vector<8x128xf32>
    %38 = math.exp %37 : vector<8x128xf32>
    %cst_27 = arith.constant 0.000000e+00 : f32
    %39 = vector.broadcast %cst_27 : f32 to vector<8x128xf32>
    %40 = arith.select %31, %38, %39 : vector<8x128xi1>, vector<8x128xf32>
    %cst_28 = arith.constant dense<0.000000e+00> : vector<8xf32>
    %41 = vector.multi_reduction <add>, %40, %cst_28 [1] : vector<8x128xf32> to vector<8xf32>
    %42 = vector.shape_cast %41 : vector<8xf32> to vector<8x1xf32>
    %cst_29 = arith.constant 0.000000e+00 : f32
    %43 = vector.broadcast %cst_29 : f32 to vector<8x1xf32>
    %44 = arith.cmpf ogt, %42, %43 : vector<8x1xf32>
    %cst_30 = arith.constant 1.000000e+00 : f32
    %45 = vector.broadcast %cst_30 : f32 to vector<8x1xf32>
    %46 = arith.select %44, %42, %45 : vector<8x1xi1>, vector<8x1xf32>
    %47 = tpu.reciprocal %46 : vector<8x1xf32> -> vector<8x1xf32>
    %48 = vector.broadcast %47 : vector<8x1xf32> to vector<8x128xf32>
    %49 = arith.mulf %40, %48 : vector<8x128xf32>
    %c0_31 = arith.constant 0 : index
    %c0_32 = arith.constant 0 : index
    %50 = vector.load %arg9[%c0_31, %c0_32] : memref<8x128xf32, #tpu.memory_space<vmem>>, vector<8x128xf32>
    tpu.vector_store %arg9[%c0_31, %c0_32], %49 {strides = array<i32>} : memref<8x128xf32, #tpu.memory_space<vmem>>, vector<8x128xf32>,
    return
  }
  func.func @transform_0(%arg0: i32) -> (i32, i32, i32) {
    %c0_i32 = arith.constant 0 : i32
    %c0_i32_0 = arith.constant 0 : i32
    %c0_i32_1 = arith.constant 0 : i32
    return %arg0, %c0_i32, %c0_i32_0 : i32, i32, i32
  }
  func.func @transform_1(%arg0: i32) -> (i32, i32, i32) {
    %c0_i32 = arith.constant 0 : i32
    %c0_i32_0 = arith.constant 0 : i32
    %c0_i32_1 = arith.constant 0 : i32
    return %c0_i32, %arg0, %c0_i32_0 : i32, i32, i32
  }
  func.func @transform_2(%arg0: i32) -> (i32, i32) {
    %c0_i32 = arith.constant 0 : i32
    %c0_i32_0 = arith.constant 0 : i32
    return %arg0, %c0_i32 : i32, i32
  }
  func.func @transform_3(%arg0: i32) -> (i32, i32) {
    %c0_i32 = arith.constant 0 : i32
    %c0_i32_0 = arith.constant 0 : i32
    %c0_i32_1 = arith.constant 0 : i32
    return %c0_i32, %c0_i32_0 : i32, i32
  }
  func.func @transform_4(%arg0: i32) -> (i32, i32) {
    %c0_i32 = arith.constant 0 : i32
    %c0_i32_0 = arith.constant 0 : i32
    %c0_i32_1 = arith.constant 0 : i32
    return %c0_i32, %c0_i32_0 : i32, i32
  }
  func.func @transform_5(%arg0: i32) -> (i32, i32) {
    %c0_i32 = arith.constant 0 : i32
    %c0_i32_0 = arith.constant 0 : i32
    %c0_i32_1 = arith.constant 0 : i32
    return %c0_i32, %c0_i32_0 : i32, i32
  }
  func.func @transform_6(%arg0: i32) -> (i32, i32) {
    %c0_i32 = arith.constant 0 : i32
    %c0_i32_0 = arith.constant 0 : i32
    %c0_i32_1 = arith.constant 0 : i32
    return %c0_i32, %c0_i32_0 : i32, i32
  }
  func.func @transform_7(%arg0: i32) -> (i32, i32) {
    %c0_i32 = arith.constant 0 : i32
    %c0_i32_0 = arith.constant 0 : i32
    %c0_i32_1 = arith.constant 0 : i32
    return %c0_i32, %c0_i32_0 : i32, i32
  }
  func.func @transform_8(%arg0: i32) -> (i32, i32) {
    %c0_i32 = arith.constant 0 : i32
    %c0_i32_0 = arith.constant 0 : i32
    return %arg0, %c0_i32 : i32, i32
  }
}

</mosaic_0001>

<llo_original>
// kernel: tpu_custom_call.1
$region0: #{tpu_custom_call.1}
  #allocation0 [shape = 'u32[]', space=smem, size = 0x4, offset = 0x4, fixed_abs, tag = 'smem constant byte address 0x4 - core index']
  #allocation1 [shape = 'u32[144,128]{1,0:T(1,128)}', space=vmem, size = 0x12000, scoped, tag = 'internal scratch']
  #allocation2 [shape = 'f32[1,1]{1,0:T(1,128)S(1)}', space=vmem, size = 0x200, scoped, tag = 'scoped memory for tpu_custom_call.1']
  %s0 = inlined_call_operand.hbm [shape: f32[8,128,128], index: 0, kind: input, shape index: {}]
  %s1 = inlined_call_operand.vmem [shape: f32[2,8,128], index: 1, kind: input, shape index: {}]
  %s2 = inlined_call_operand.vmem [shape: s32[8,1], index: 2, kind: input, shape index: {}]
  %s3 = inlined_call_operand.hbm [shape: f32[128,128], index: 3, kind: input, shape index: {}]
  %s4 = inlined_call_operand.hbm [shape: f32[128,128], index: 4, kind: input, shape index: {}]
  %s5 = inlined_call_operand.vmem [shape: f32[1,128], index: 5, kind: input, shape index: {}]
  %s6 = inlined_call_operand.vmem [shape: f32[1,128], index: 6, kind: input, shape index: {}]
  %s7 = inlined_call_operand.<no memory space> [shape: f32[1,1], index: 7, kind: input, shape index: {}]
  %s8 = inlined_call_operand.hbm [shape: f32[8,128], index: 8, kind: output, shape index: {}]
  %s9 = sld [smem:[#allocation0]]
  $region54: #{tpu_custom_call.1} parent=0
    _
  %s11 = ssub.s32 1, %s9
  %s12 = scalar_select 0, %s11, %s9
  %v13 = vstv %s7
  %14 = vst [vmem:[#allocation2] sm:$0x1] %v13
  $region1: #{tpu_custom_call.1} parent=0
    #allocation3 [shape = 'u8[524288]{0}', space=vmem, size = 0x80000, scoped, tag = 'input window, operand 0, single buffered']
    #allocation4 [shape = 's32[1]{0}', space=sflag, size = 0x4, scoped, tag = 'scoped memory for tpu_custom_call.1']
    #allocation5 [shape = 's32[1]{0}', space=sflag, size = 0x4, scoped, tag = 'scoped memory for tpu_custom_call.1']
    #allocation6 [shape = 'u8[65536]{0}', space=vmem, size = 0x10000, scoped, tag = 'input window, operand 3, single buffered']
    #allocation7 [shape = 's32[1]{0}', space=sflag, size = 0x4, scoped, tag = 'scoped memory for tpu_custom_call.1']
    #allocation8 [shape = 'u8[65536]{0}', space=vmem, size = 0x10000, scoped, tag = 'input window, operand 4, single buffered']
    #allocation9 [shape = 'u8[4096]{0}', space=vmem, size = 0x1000, scoped, tag = 'output window, operand 0, single buffered']
    %15 = vsyncpa [#allocation4], 0
    %16 = vsyncpa [#allocation7], 0
    %17 = vsyncpa [#allocation5], 0
    // Predicated region
    $region2: #{tpu_custom_call.1} parent=1 // pred_check
      _
    $region3: #{tpu_custom_call.1} parent=1 // pred_check_branch
      %19 = sbr.rel (0) target = $region5
    $region4: #{tpu_custom_call.1} parent=1 // pred_region
      %s21 = ssub.s32 16384, 16384
      %22 = vsyncadd [#allocation4], %s21
      %s23 = sshll.u32 [#allocation3], 4
      %s24 = int_to_ptr.vmem [resolvable:$true] %s23
      %29 = dma.hbm_to_vmem [thread:$0]  %s0, 16384, %s24, [#allocation4], 128, 128, 8
    $region5: #{tpu_custom_call.1} parent=1 // pred_fallthru
      _
    // Predicated region
    $region6: #{tpu_custom_call.1} parent=1 // pred_check
      _
    $region7: #{tpu_custom_call.1} parent=1 // pred_check_branch
      %31 = sbr.rel (0) target = $region9
    $region8: #{tpu_custom_call.1} parent=1 // pred_region
      _
    $region9: #{tpu_custom_call.1} parent=1 // pred_fallthru
      _
    // Predicated region
    $region10: #{tpu_custom_call.1} parent=1 // pred_check
      _
    $region11: #{tpu_custom_call.1} parent=1 // pred_check_branch
      %33 = sbr.rel (0) target = $region13
    $region12: #{tpu_custom_call.1} parent=1 // pred_region
      _
    $region13: #{tpu_custom_call.1} parent=1 // pred_fallthru
      _
    // Predicated region
    $region14: #{tpu_custom_call.1} parent=1 // pred_check
      _
    $region15: #{tpu_custom_call.1} parent=1 // pred_check_branch
      %35 = sbr.rel (0) target = $region17
    $region16: #{tpu_custom_call.1} parent=1 // pred_region
      %s37 = ssub.s32 2048, 2048
      %38 = vsyncadd [#allocation7], %s37
      %s39 = sshll.u32 [#allocation6], 4
      %s40 = int_to_ptr.vmem [resolvable:$true] %s39
      %45 = dma.hbm_to_vmem [thread:$0]  %s3, 2048, %s40, [#allocation7], 128, 128, 8
    $region17: #{tpu_custom_call.1} parent=1 // pred_fallthru
      _
    // Predicated region
    $region18: #{tpu_custom_call.1} parent=1 // pred_check
      _
    $region19: #{tpu_custom_call.1} parent=1 // pred_check_branch
      %47 = sbr.rel (0) target = $region21
    $region20: #{tpu_custom_call.1} parent=1 // pred_region
      %s49 = ssub.s32 2048, 2048
      %50 = vsyncadd [#allocation7], %s49
      %s51 = sshll.u32 [#allocation8], 4
      %s52 = int_to_ptr.vmem [resolvable:$true] %s51
      %57 = dma.hbm_to_vmem [thread:$0]  %s4, 2048, %s52, [#allocation7], 128, 128, 8
    $region21: #{tpu_custom_call.1} parent=1 // pred_fallthru
      _
    // Predicated region
    $region22: #{tpu_custom_call.1} parent=1 // pred_check
      _
    $region23: #{tpu_custom_call.1} parent=1 // pred_check_branch
      %59 = sbr.rel (0) target = $region25
    $region24: #{tpu_custom_call.1} parent=1 // pred_region
      _
    $region25: #{tpu_custom_call.1} parent=1 // pred_fallthru
      _
    // Predicated region
    $region26: #{tpu_custom_call.1} parent=1 // pred_check
      _
    $region27: #{tpu_custom_call.1} parent=1 // pred_check_branch
      %61 = sbr.rel (0) target = $region29
    $region28: #{tpu_custom_call.1} parent=1 // pred_region
      _
    $region29: #{tpu_custom_call.1} parent=1 // pred_fallthru
      _
    // Predicated region
    $region30: #{tpu_custom_call.1} parent=1 // pred_check
      _
    $region31: #{tpu_custom_call.1} parent=1 // pred_check_branch
      %63 = sbr.rel (0) target = $region33
    $region32: #{tpu_custom_call.1} parent=1 // pred_region
      _
    $region33: #{tpu_custom_call.1} parent=1 // pred_fallthru
      _
    // Predicated region
    $region34: #{tpu_custom_call.1} parent=1 // pred_check
      _
    $region35: #{tpu_custom_call.1} parent=1 // pred_check_branch
      %65 = sbr.rel (0) target = $region37
    $region36: #{tpu_custom_call.1} parent=1 // pred_region
      %66 = dma.done [#allocation4], 16384
    $region37: #{tpu_custom_call.1} parent=1 // pred_fallthru
      _
    // Predicated region
    $region38: #{tpu_custom_call.1} parent=1 // pred_check
      _
    $region39: #{tpu_custom_call.1} parent=1 // pred_check_branch
      %68 = sbr.rel (0) target = $region41
    $region40: #{tpu_custom_call.1} parent=1 // pred_region
      %69 = dma.done [#allocation7], 2048
    $region41: #{tpu_custom_call.1} parent=1 // pred_fallthru
      _
    // Predicated region
    $region42: #{tpu_custom_call.1} parent=1 // pred_check
      _
    $region43: #{tpu_custom_call.1} parent=1 // pred_check_branch
      %71 = sbr.rel (0) target = $region45
    $region44: #{tpu_custom_call.1} parent=1 // pred_region
      %72 = dma.done [#allocation7], 2048
    $region45: #{tpu_custom_call.1} parent=1 // pred_fallthru
      _
    %v73 = vld [vmem:[%s1] sm:$0xff]
    %v74 = vld [vmem:[%s1 + $0x8] sm:$0xff]
    %v75 = vadd.f32 %v73, %v74
    %v76 = vmul.f32 %v75, 0.5
    %v77 = vld [vmem:[#allocation8] sm:$0xff]
    %v78 = vld [vmem:[#allocation8 + $0x8] sm:$0xff]
    %v79 = vld [vmem:[#allocation8 + $0x10] sm:$0xff]
    %v80 = vld [vmem:[#allocation8 + $0x18] sm:$0xff]
    %v81 = vld [vmem:[#allocation8 + $0x20] sm:$0xff]
    %v82 = vld [vmem:[#allocation8 + $0x28] sm:$0xff]
    %v83 = vld [vmem:[#allocation8 + $0x30] sm:$0xff]
    %v84 = vld [vmem:[#allocation8 + $0x38] sm:$0xff]
    %v85 = vld [vmem:[#allocation8 + $0x40] sm:$0xff]
    %v86 = vld [vmem:[#allocation8 + $0x48] sm:$0xff]
    %v87 = vld [vmem:[#allocation8 + $0x50] sm:$0xff]
    %v88 = vld [vmem:[#allocation8 + $0x58] sm:$0xff]
    %v89 = vld [vmem:[#allocation8 + $0x60] sm:$0xff]
    %v90 = vld [vmem:[#allocation8 + $0x68] sm:$0xff]
    %v91 = vld [vmem:[#allocation8 + $0x70] sm:$0xff]
    %v92 = vld [vmem:[#allocation8 + $0x78] sm:$0xff]
    %v93 = vld [vmem:[%s5] sm:$0x1]
    %v95 = vlaneseq
    %v96 = vshrl.u32 %v95, 7
    %v97 = vsub.s32 0, %v96
    %v98 = vrot.slane %v93, %v97
    %100 = vmatprep.subr.mxu0 0.0
    %101 = vmatpush1.msra.mxu0 %v77
    %102 = vmatprep.subr.mxu0 0.0
    %103 = vmatpush1.msra.mxu0 %v78
    %104 = vmatprep.subr.mxu0 0.0
    %105 = vmatpush1.msra.mxu0 %v79
    %106 = vmatprep.subr.mxu0 0.0
    %107 = vmatpush1.msra.mxu0 %v80
    %108 = vmatprep.subr.mxu0 0.0
    %109 = vmatpush1.msra.mxu0 %v81
    %110 = vmatprep.subr.mxu0 0.0
    %111 = vmatpush1.msra.mxu0 %v82
    %112 = vmatprep.subr.mxu0 0.0
    %113 = vmatpush1.msra.mxu0 %v83
    %114 = vmatprep.subr.mxu0 0.0
    %115 = vmatpush1.msra.mxu0 %v84
    %116 = vmatprep.subr.mxu0 0.0
    %117 = vmatpush1.msra.mxu0 %v85
    %118 = vmatprep.subr.mxu0 0.0
    %119 = vmatpush1.msra.mxu0 %v86
    %120 = vmatprep.subr.mxu0 0.0
    %121 = vmatpush1.msra.mxu0 %v87
    %122 = vmatprep.subr.mxu0 0.0
    %123 = vmatpush1.msra.mxu0 %v88
    %124 = vmatprep.subr.mxu0 0.0
    %125 = vmatpush1.msra.mxu0 %v89
    %126 = vmatprep.subr.mxu0 0.0
    %127 = vmatpush1.msra.mxu0 %v90
    %128 = vmatprep.subr.mxu0 0.0
    %129 = vmatpush1.msra.mxu0 %v91
    %130 = vmatprep.subr.mxu0 0.0
    %131 = vmatpush1.msra.mxu0 %v92
    %132 = vmatprep.subr.mxu0 0.0
    %133 = vmatpush1.msra.mxu0 0.0
    %134 = vmatprep.subr.mxu0 0.0
    %135 = vmatpush1.msra.mxu0 0.0
    %136 = vmatprep.subr.mxu0 0.0
    %137 = vmatpush1.msra.mxu0 0.0
    %138 = vmatprep.subr.mxu0 0.0
    %139 = vmatpush1.msra.mxu0 0.0
    %140 = vmatprep.subr.mxu0 0.0
    %141 = vmatpush1.msra.mxu0 0.0
    %142 = vmatprep.subr.mxu0 0.0
    %143 = vmatpush1.msra.mxu0 0.0
    %144 = vmatprep.subr.mxu0 0.0
    %145 = vmatpush1.msra.mxu0 0.0
    %146 = vmatprep.subr.mxu0 0.0
    %147 = vmatpush1.msra.mxu0 0.0
    %148 = vmatprep.subr.mxu0 0.0
    %149 = vmatpush1.msra.mxu0 0.0
    %150 = vmatprep.subr.mxu0 0.0
    %151 = vmatpush1.msra.mxu0 0.0
    %152 = vmatprep.subr.mxu0 0.0
    %153 = vmatpush1.msra.mxu0 0.0
    %154 = vmatprep.subr.mxu0 0.0
    %155 = vmatpush1.msra.mxu0 0.0
    %156 = vmatprep.subr.mxu0 0.0
    %157 = vmatpush1.msra.mxu0 0.0
    %158 = vmatprep.subr.mxu0 0.0
    %159 = vmatpush1.msra.mxu0 0.0
    %160 = vmatprep.subr.mxu0 0.0
    %161 = vmatpush1.msra.mxu0 0.0
    %162 = vmatprep.subr.mxu0 0.0
    %163 = vmatpush1.msra.mxu0 0.0
    %164 = vmatprep.mubr.f32.mxu0 0.0
    %165 = vmatmul.mubr.f32.gmra.mrb[0].mxu0 %v76
    %v166 = vpop.f32.mrb[0].mxu0
    %v167 = vadd.f32 %v98, %v166
    %v168 = vpop.f32.mrb[0].mxu0
    %169 = vdwg.mxu0
    %v171 = vcombine.high %v167, %v167
    %v173 = vunpack.c.l.s4 1966171168
    %v174 = vunpack.c.0.s8 %v173
    %v175 = vlaneseq
    %v176 = vshrl.u32 %v175, 7
    %v177 = vsub.s32 %v174, %v176
    %v178 = vrot.slane %v167, %v177
    %v180 = vunpack.c.l.s4 1966171168
    %v181 = vunpack.c.0.s8 %v180
    %v182 = vlaneseq
    %v183 = vshrl.u32 %v182, 7
    %v184 = vsub.s32 %v181, %v183
    %v185 = vrot.slane %v171, %v184
    %v186 = vcombine.high %v178, %v178
    %v187 = vcombine.high %v185, %v185
    %v189 = vunpack.c.l.s4 1966171168
    %v190 = vunpack.c.0.s8 %v189
    %v191 = vlaneseq
    %v192 = vshrl.u32 %v191, 7
    %v193 = vsub.s32 %v190, %v192
    %v194 = vrot.slane %v178, %v193
    %v196 = vunpack.c.l.s4 1966171168
    %v197 = vunpack.c.0.s8 %v196
    %v198 = vlaneseq
    %v199 = vshrl.u32 %v198, 7
    %v200 = vsub.s32 %v197, %v199
    %v201 = vrot.slane %v185, %v200
    %v203 = vunpack.c.l.s4 1966171168
    %v204 = vunpack.c.0.s8 %v203
    %v205 = vlaneseq
    %v206 = vshrl.u32 %v205, 7
    %v207 = vsub.s32 %v204, %v206
    %v208 = vrot.slane %v186, %v207
    %v210 = vunpack.c.l.s4 1966171168
    %v211 = vunpack.c.0.s8 %v210
    %v212 = vlaneseq
    %v213 = vshrl.u32 %v212, 7
    %v214 = vsub.s32 %v211, %v213
    %v215 = vrot.slane %v187, %v214
    %v216 = vcombine.high %v194, %v194
    %v217 = vcombine.high %v201, %v201
    %v218 = vcombine.high %v208, %v208
    %v219 = vcombine.high %v215, %v215
    %v220 = vld [vmem:[%s6] sm:$0x1]
    %v221 = vld [vmem:[#allocation2] sm:$0x1]
    %v222 = vld [vmem:[#allocation6] sm:$0xff]
    %v223 = vld [vmem:[#allocation6 + $0x8] sm:$0xff]
    %v224 = vld [vmem:[#allocation6 + $0x10] sm:$0xff]
    %v225 = vld [vmem:[#allocation6 + $0x18] sm:$0xff]
    %v226 = vld [vmem:[#allocation6 + $0x20] sm:$0xff]
    %v227 = vld [vmem:[#allocation6 + $0x28] sm:$0xff]
    %v228 = vld [vmem:[#allocation6 + $0x30] sm:$0xff]
    %v229 = vld [vmem:[#allocation6 + $0x38] sm:$0xff]
    %v230 = vld [vmem:[#allocation6 + $0x40] sm:$0xff]
    %v231 = vld [vmem:[#allocation6 + $0x48] sm:$0xff]
    %v232 = vld [vmem:[#allocation6 + $0x50] sm:$0xff]
    %v233 = vld [vmem:[#allocation6 + $0x58] sm:$0xff]
    %v234 = vld [vmem:[#allocation6 + $0x60] sm:$0xff]
    %v235 = vld [vmem:[#allocation6 + $0x68] sm:$0xff]
    %v236 = vld [vmem:[#allocation6 + $0x70] sm:$0xff]
    %v237 = vld [vmem:[#allocation6 + $0x78] sm:$0xff]
    %v238 = vld [vmem:[#allocation3] sm:$0xff]
    %v239 = vld [vmem:[#allocation3 + $0x8] sm:$0xff]
    %v240 = vld [vmem:[#allocation3 + $0x10] sm:$0xff]
    %v241 = vld [vmem:[#allocation3 + $0x18] sm:$0xff]
    %v242 = vld [vmem:[#allocation3 + $0x20] sm:$0xff]
    %v243 = vld [vmem:[#allocation3 + $0x28] sm:$0xff]
    %v244 = vld [vmem:[#allocation3 + $0x30] sm:$0xff]
    %v245 = vld [vmem:[#allocation3 + $0x38] sm:$0xff]
    %v246 = vld [vmem:[#allocation3 + $0x40] sm:$0xff]
    %v247 = vld [vmem:[#allocation3 + $0x48] sm:$0xff]
    %v248 = vld [vmem:[#allocation3 + $0x50] sm:$0xff]
    %v249 = vld [vmem:[#allocation3 + $0x58] sm:$0xff]
    %v250 = vld [vmem:[#allocation3 + $0x60] sm:$0xff]
    %v251 = vld [vmem:[#allocation3 + $0x68] sm:$0xff]
    %v252 = vld [vmem:[#allocation3 + $0x70] sm:$0xff]
    %v253 = vld [vmem:[#allocation3 + $0x78] sm:$0xff]
    %v254 = vld [vmem:[#allocation3 + $0x80] sm:$0xff]
    %v255 = vld [vmem:[#allocation3 + $0x88] sm:$0xff]
    %v256 = vld [vmem:[#allocation3 + $0x90] sm:$0xff]
    %v257 = vld [vmem:[#allocation3 + $0x98] sm:$0xff]
    %v258 = vld [vmem:[#allocation3 + $0xa0] sm:$0xff]
    %v259 = vld [vmem:[#allocation3 + $0xa8] sm:$0xff]
    %v260 = vld [vmem:[#allocation3 + $0xb0] sm:$0xff]
    %v261 = vld [vmem:[#allocation3 + $0xb8] sm:$0xff]
    %v262 = vld [vmem:[#allocation3 + $0xc0] sm:$0xff]
    %v263 = vld [vmem:[#allocation3 + $0xc8] sm:$0xff]
    %v264 = vld [vmem:[#allocation3 + $0xd0] sm:$0xff]
    %v265 = vld [vmem:[#allocation3 + $0xd8] sm:$0xff]
    %v266 = vld [vmem:[#allocation3 + $0xe0] sm:$0xff]
    %v267 = vld [vmem:[#allocation3 + $0xe8] sm:$0xff]
    %v268 = vld [vmem:[#allocation3 + $0xf0] sm:$0xff]
    %v269 = vld [vmem:[#allocation3 + $0xf8] sm:$0xff]
    %v270 = vld [vmem:[#allocation3 + $0x100] sm:$0xff]
    %v271 = vld [vmem:[#allocation3 + $0x108] sm:$0xff]
    %v272 = vld [vmem:[#allocation3 + $0x110] sm:$0xff]
    %v273 = vld [vmem:[#allocation3 + $0x118] sm:$0xff]
    %v274 = vld [vmem:[#allocation3 + $0x120] sm:$0xff]
    %v275 = vld [vmem:[#allocation3 + $0x128] sm:$0xff]
    %v276 = vld [vmem:[#allocation3 + $0x130] sm:$0xff]
    %v277 = vld [vmem:[#allocation3 + $0x138] sm:$0xff]
    %v278 = vld [vmem:[#allocation3 + $0x140] sm:$0xff]
    %v279 = vld [vmem:[#allocation3 + $0x148] sm:$0xff]
    %v280 = vld [vmem:[#allocation3 + $0x150] sm:$0xff]
    %v281 = vld [vmem:[#allocation3 + $0x158] sm:$0xff]
    %v282 = vld [vmem:[#allocation3 + $0x160] sm:$0xff]
    %v283 = vld [vmem:[#allocation3 + $0x168] sm:$0xff]
    %v284 = vld [vmem:[#allocation3 + $0x170] sm:$0xff]
    %v285 = vld [vmem:[#allocation3 + $0x178] sm:$0xff]
    %v286 = vld [vmem:[#allocation3 + $0x180] sm:$0xff]
    %v287 = vld [vmem:[#allocation3 + $0x188] sm:$0xff]
    %v288 = vld [vmem:[#allocation3 + $0x190] sm:$0xff]
    %v289 = vld [vmem:[#allocation3 + $0x198] sm:$0xff]
    %v290 = vld [vmem:[#allocation3 + $0x1a0] sm:$0xff]
    %v291 = vld [vmem:[#allocation3 + $0x1a8] sm:$0xff]
    %v292 = vld [vmem:[#allocation3 + $0x1b0] sm:$0xff]
    %v293 = vld [vmem:[#allocation3 + $0x1b8] sm:$0xff]
    %v294 = vld [vmem:[#allocation3 + $0x1c0] sm:$0xff]
    %v295 = vld [vmem:[#allocation3 + $0x1c8] sm:$0xff]
    %v296 = vld [vmem:[#allocation3 + $0x1d0] sm:$0xff]
    %v297 = vld [vmem:[#allocation3 + $0x1d8] sm:$0xff]
    %v298 = vld [vmem:[#allocation3 + $0x1e0] sm:$0xff]
    %v299 = vld [vmem:[#allocation3 + $0x1e8] sm:$0xff]
    %v300 = vld [vmem:[#allocation3 + $0x1f0] sm:$0xff]
    %v301 = vld [vmem:[#allocation3 + $0x1f8] sm:$0xff]
    %v302 = vld [vmem:[#allocation3 + $0x200] sm:$0xff]
    %v303 = vld [vmem:[#allocation3 + $0x208] sm:$0xff]
    %v304 = vld [vmem:[#allocation3 + $0x210] sm:$0xff]
    %v305 = vld [vmem:[#allocation3 + $0x218] sm:$0xff]
    %v306 = vld [vmem:[#allocation3 + $0x220] sm:$0xff]
    %v307 = vld [vmem:[#allocation3 + $0x228] sm:$0xff]
    %v308 = vld [vmem:[#allocation3 + $0x230] sm:$0xff]
    %v309 = vld [vmem:[#allocation3 + $0x238] sm:$0xff]
    %v310 = vld [vmem:[#allocation3 + $0x240] sm:$0xff]
    %v311 = vld [vmem:[#allocation3 + $0x248] sm:$0xff]
    %v312 = vld [vmem:[#allocation3 + $0x250] sm:$0xff]
    %v313 = vld [vmem:[#allocation3 + $0x258] sm:$0xff]
    %v314 = vld [vmem:[#allocation3 + $0x260] sm:$0xff]
    %v315 = vld [vmem:[#allocation3 + $0x268] sm:$0xff]
    %v316 = vld [vmem:[#allocation3 + $0x270] sm:$0xff]
    %v317 = vld [vmem:[#allocation3 + $0x278] sm:$0xff]
    %v318 = vld [vmem:[#allocation3 + $0x280] sm:$0xff]
    %v319 = vld [vmem:[#allocation3 + $0x288] sm:$0xff]
    %v320 = vld [vmem:[#allocation3 + $0x290] sm:$0xff]
    %v321 = vld [vmem:[#allocation3 + $0x298] sm:$0xff]
    %v322 = vld [vmem:[#allocation3 + $0x2a0] sm:$0xff]
    %v323 = vld [vmem:[#allocation3 + $0x2a8] sm:$0xff]
    %v324 = vld [vmem:[#allocation3 + $0x2b0] sm:$0xff]
    %v325 = vld [vmem:[#allocation3 + $0x2b8] sm:$0xff]
    %v326 = vld [vmem:[#allocation3 + $0x2c0] sm:$0xff]
    %v327 = vld [vmem:[#allocation3 + $0x2c8] sm:$0xff]
    %v328 = vld [vmem:[#allocation3 + $0x2d0] sm:$0xff]
    %v329 = vld [vmem:[#allocation3 + $0x2d8] sm:$0xff]
    %v330 = vld [vmem:[#allocation3 + $0x2e0] sm:$0xff]
    %v331 = vld [vmem:[#allocation3 + $0x2e8] sm:$0xff]
    %v332 = vld [vmem:[#allocation3 + $0x2f0] sm:$0xff]
    %v333 = vld [vmem:[#allocation3 + $0x2f8] sm:$0xff]
    %v334 = vld [vmem:[#allocation3 + $0x300] sm:$0xff]
    %v335 = vld [vmem:[#allocation3 + $0x308] sm:$0xff]
    %v336 = vld [vmem:[#allocation3 + $0x310] sm:$0xff]
    %v337 = vld [vmem:[#allocation3 + $0x318] sm:$0xff]
    %v338 = vld [vmem:[#allocation3 + $0x320] sm:$0xff]
    %v339 = vld [vmem:[#allocation3 + $0x328] sm:$0xff]
    %v340 = vld [vmem:[#allocation3 + $0x330] sm:$0xff]
    %v341 = vld [vmem:[#allocation3 + $0x338] sm:$0xff]
    %v342 = vld [vmem:[#allocation3 + $0x340] sm:$0xff]
    %v343 = vld [vmem:[#allocation3 + $0x348] sm:$0xff]
    %v344 = vld [vmem:[#allocation3 + $0x350] sm:$0xff]
    %v345 = vld [vmem:[#allocation3 + $0x358] sm:$0xff]
    %v346 = vld [vmem:[#allocation3 + $0x360] sm:$0xff]
    %v347 = vld [vmem:[#allocation3 + $0x368] sm:$0xff]
    %v348 = vld [vmem:[#allocation3 + $0x370] sm:$0xff]
    %v349 = vld [vmem:[#allocation3 + $0x378] sm:$0xff]
    %v350 = vld [vmem:[#allocation3 + $0x380] sm:$0xff]
    %v351 = vld [vmem:[#allocation3 + $0x388] sm:$0xff]
    %v352 = vld [vmem:[#allocation3 + $0x390] sm:$0xff]
    %v353 = vld [vmem:[#allocation3 + $0x398] sm:$0xff]
    %v354 = vld [vmem:[#allocation3 + $0x3a0] sm:$0xff]
    %v355 = vld [vmem:[#allocation3 + $0x3a8] sm:$0xff]
    %v356 = vld [vmem:[#allocation3 + $0x3b0] sm:$0xff]
    %v357 = vld [vmem:[#allocation3 + $0x3b8] sm:$0xff]
    %v358 = vld [vmem:[#allocation3 + $0x3c0] sm:$0xff]
    %v359 = vld [vmem:[#allocation3 + $0x3c8] sm:$0xff]
    %v360 = vld [vmem:[#allocation3 + $0x3d0] sm:$0xff]
    %v361 = vld [vmem:[#allocation3 + $0x3d8] sm:$0xff]
    %v362 = vld [vmem:[#allocation3 + $0x3e0] sm:$0xff]
    %v363 = vld [vmem:[#allocation3 + $0x3e8] sm:$0xff]
    %v364 = vld [vmem:[#allocation3 + $0x3f0] sm:$0xff]
    %v365 = vld [vmem:[#allocation3 + $0x3f8] sm:$0xff]
    %366 = vmatprep.subr.mxu0 0.0
    %367 = vmatpush1.msra.mxu0 %v222
    %368 = vmatprep.subr.mxu0 0.0
    %369 = vmatpush1.msra.mxu0 %v223
    %370 = vmatprep.subr.mxu0 0.0
    %371 = vmatpush1.msra.mxu0 %v224
    %372 = vmatprep.subr.mxu0 0.0
    %373 = vmatpush1.msra.mxu0 %v225
    %374 = vmatprep.subr.mxu0 0.0
    %375 = vmatpush1.msra.mxu0 %v226
    %376 = vmatprep.subr.mxu0 0.0
    %377 = vmatpush1.msra.mxu0 %v227
    %378 = vmatprep.subr.mxu0 0.0
    %379 = vmatpush1.msra.mxu0 %v228
    %380 = vmatprep.subr.mxu0 0.0
    %381 = vmatpush1.msra.mxu0 %v229
    %382 = vmatprep.subr.mxu0 0.0
    %383 = vmatpush1.msra.mxu0 %v230
    %384 = vmatprep.subr.mxu0 0.0
    %385 = vmatpush1.msra.mxu0 %v231
    %386 = vmatprep.subr.mxu0 0.0
    %387 = vmatpush1.msra.mxu0 %v232
    %388 = vmatprep.subr.mxu0 0.0
    %389 = vmatpush1.msra.mxu0 %v233
    %390 = vmatprep.subr.mxu0 0.0
    %391 = vmatpush1.msra.mxu0 %v234
    %392 = vmatprep.subr.mxu0 0.0
    %393 = vmatpush1.msra.mxu0 %v235
    %394 = vmatprep.subr.mxu0 0.0
    %395 = vmatpush1.msra.mxu0 %v236
    %396 = vmatprep.subr.mxu0 0.0
    %397 = vmatpush1.msra.mxu0 %v237
    %398 = vmatprep.subr.mxu0 0.0
    %399 = vmatpush1.msra.mxu0 0.0
    %400 = vmatprep.subr.mxu0 0.0
    %401 = vmatpush1.msra.mxu0 0.0
    %402 = vmatprep.subr.mxu0 0.0
    %403 = vmatpush1.msra.mxu0 0.0
    %404 = vmatprep.subr.mxu0 0.0
    %405 = vmatpush1.msra.mxu0 0.0
    %406 = vmatprep.subr.mxu0 0.0
    %407 = vmatpush1.msra.mxu0 0.0
    %408 = vmatprep.subr.mxu0 0.0
    %409 = vmatpush1.msra.mxu0 0.0
    %410 = vmatprep.subr.mxu0 0.0
    %411 = vmatpush1.msra.mxu0 0.0
    %412 = vmatprep.subr.mxu0 0.0
    %413 = vmatpush1.msra.mxu0 0.0
    %414 = vmatprep.subr.mxu0 0.0
    %415 = vmatpush1.msra.mxu0 0.0
    %416 = vmatprep.subr.mxu0 0.0
    %417 = vmatpush1.msra.mxu0 0.0
    %418 = vmatprep.subr.mxu0 0.0
    %419 = vmatpush1.msra.mxu0 0.0
    %420 = vmatprep.subr.mxu0 0.0
    %421 = vmatpush1.msra.mxu0 0.0
    %422 = vmatprep.subr.mxu0 0.0
    %423 = vmatpush1.msra.mxu0 0.0
    %424 = vmatprep.subr.mxu0 0.0
    %425 = vmatpush1.msra.mxu0 0.0
    %426 = vmatprep.subr.mxu0 0.0
    %427 = vmatpush1.msra.mxu0 0.0
    %428 = vmatprep.subr.mxu0 0.0
    %429 = vmatpush1.msra.mxu0 0.0
    %430 = vmatprep.mubr.f32.mxu0 0.0
    %431 = vmatmul.mubr.f32.gmra.mrb[0].mxu0 %v238
    %v432 = vpop.f32.mrb[0].mxu0
    %v433 = vadd.f32 0.0, %v432
    %v434 = vpop.f32.mrb[0].mxu0
    %435 = vmatprep.mubr.f32.mxu0 0.0
    %436 = vmatmul.mubr.f32.gmra.mrb[0].mxu0 %v239
    %v437 = vpop.f32.mrb[0].mxu0
    %v438 = vadd.f32 0.0, %v437
    %v439 = vpop.f32.mrb[0].mxu0
    %440 = vmatprep.mubr.f32.mxu0 0.0
    %441 = vmatmul.mubr.f32.gmra.mrb[0].mxu0 %v240
    %v442 = vpop.f32.mrb[0].mxu0
    %v443 = vadd.f32 0.0, %v442
    %v444 = vpop.f32.mrb[0].mxu0
    %445 = vmatprep.mubr.f32.mxu0 0.0
    %446 = vmatmul.mubr.f32.gmra.mrb[0].mxu0 %v241
    %v447 = vpop.f32.mrb[0].mxu0
    %v448 = vadd.f32 0.0, %v447
    %v449 = vpop.f32.mrb[0].mxu0
    %450 = vmatprep.mubr.f32.mxu0 0.0
    %451 = vmatmul.mubr.f32.gmra.mrb[0].mxu0 %v242
    %v452 = vpop.f32.mrb[0].mxu0
    %v453 = vadd.f32 0.0, %v452
    %v454 = vpop.f32.mrb[0].mxu0
    %455 = vmatprep.mubr.f32.mxu0 0.0
    %456 = vmatmul.mubr.f32.gmra.mrb[0].mxu0 %v243
    %v457 = vpop.f32.mrb[0].mxu0
    %v458 = vadd.f32 0.0, %v457
    %v459 = vpop.f32.mrb[0].mxu0
    %460 = vmatprep.mubr.f32.mxu0 0.0
    %461 = vmatmul.mubr.f32.gmra.mrb[0].mxu0 %v244
    %v462 = vpop.f32.mrb[0].mxu0
    %v463 = vadd.f32 0.0, %v462
    %v464 = vpop.f32.mrb[0].mxu0
    %465 = vmatprep.mubr.f32.mxu0 0.0
    %466 = vmatmul.mubr.f32.gmra.mrb[0].mxu0 %v245
    %v467 = vpop.f32.mrb[0].mxu0
    %v468 = vadd.f32 0.0, %v467
    %v469 = vpop.f32.mrb[0].mxu0
    %470 = vmatprep.mubr.f32.mxu0 0.0
    %471 = vmatmul.mubr.f32.gmra.mrb[0].mxu0 %v246
    %v472 = vpop.f32.mrb[0].mxu0
    %v473 = vadd.f32 0.0, %v472
    %v474 = vpop.f32.mrb[0].mxu0
    %475 = vmatprep.mubr.f32.mxu0 0.0
    %476 = vmatmul.mubr.f32.gmra.mrb[0].mxu0 %v247
    %v477 = vpop.f32.mrb[0].mxu0
    %v478 = vadd.f32 0.0, %v477
    %v479 = vpop.f32.mrb[0].mxu0
    %480 = vmatprep.mubr.f32.mxu0 0.0
    %481 = vmatmul.mubr.f32.gmra.mrb[0].mxu0 %v248
    %v482 = vpop.f32.mrb[0].mxu0
    %v483 = vadd.f32 0.0, %v482
    %v484 = vpop.f32.mrb[0].mxu0
    %485 = vmatprep.mubr.f32.mxu0 0.0
    %486 = vmatmul.mubr.f32.gmra.mrb[0].mxu0 %v249
    %v487 = vpop.f32.mrb[0].mxu0
    %v488 = vadd.f32 0.0, %v487
    %v489 = vpop.f32.mrb[0].mxu0
    %490 = vmatprep.mubr.f32.mxu0 0.0
    %491 = vmatmul.mubr.f32.gmra.mrb[0].mxu0 %v250
    %v492 = vpop.f32.mrb[0].mxu0
    %v493 = vadd.f32 0.0, %v492
    %v494 = vpop.f32.mrb[0].mxu0
    %495 = vmatprep.mubr.f32.mxu0 0.0
    %496 = vmatmul.mubr.f32.gmra.mrb[0].mxu0 %v251
    %v497 = vpop.f32.mrb[0].mxu0
    %v498 = vadd.f32 0.0, %v497
    %v499 = vpop.f32.mrb[0].mxu0
    %500 = vmatprep.mubr.f32.mxu0 0.0
    %501 = vmatmul.mubr.f32.gmra.mrb[0].mxu0 %v252
    %v502 = vpop.f32.mrb[0].mxu0
    %v503 = vadd.f32 0.0, %v502
    %v504 = vpop.f32.mrb[0].mxu0
    %505 = vmatprep.mubr.f32.mxu0 0.0
    %506 = vmatmul.mubr.f32.gmra.mrb[0].mxu0 %v253
    %v507 = vpop.f32.mrb[0].mxu0
    %v508 = vadd.f32 0.0, %v507
    %v509 = vpop.f32.mrb[0].mxu0
    %510 = vmatprep.mubr.f32.mxu0 0.0
    %511 = vmatmul.mubr.f32.gmra.mrb[0].mxu0 %v254
    %v512 = vpop.f32.mrb[0].mxu0
    %v513 = vadd.f32 0.0, %v512
    %v514 = vpop.f32.mrb[0].mxu0
    %515 = vmatprep.mubr.f32.mxu0 0.0
    %516 = vmatmul.mubr.f32.gmra.mrb[0].mxu0 %v255
    %v517 = vpop.f32.mrb[0].mxu0
    %v518 = vadd.f32 0.0, %v517
    %v519 = vpop.f32.mrb[0].mxu0
    %520 = vmatprep.mubr.f32.mxu0 0.0
    %521 = vmatmul.mubr.f32.gmra.mrb[0].mxu0 %v256
    %v522 = vpop.f32.mrb[0].mxu0
    %v523 = vadd.f32 0.0, %v522
    %v524 = vpop.f32.mrb[0].mxu0
    %525 = vmatprep.mubr.f32.mxu0 0.0
    %526 = vmatmul.mubr.f32.gmra.mrb[0].mxu0 %v257
    %v527 = vpop.f32.mrb[0].mxu0
    %v528 = vadd.f32 0.0, %v527
    %v529 = vpop.f32.mrb[0].mxu0
    %530 = vmatprep.mubr.f32.mxu0 0.0
    %531 = vmatmul.mubr.f32.gmra.mrb[0].mxu0 %v258
    %v532 = vpop.f32.mrb[0].mxu0
    %v533 = vadd.f32 0.0, %v532
    %v534 = vpop.f32.mrb[0].mxu0
    %535 = vmatprep.mubr.f32.mxu0 0.0
    %536 = vmatmul.mubr.f32.gmra.mrb[0].mxu0 %v259
    %v537 = vpop.f32.mrb[0].mxu0
    %v538 = vadd.f32 0.0, %v537
    %v539 = vpop.f32.mrb[0].mxu0
    %540 = vmatprep.mubr.f32.mxu0 0.0
    %541 = vmatmul.mubr.f32.gmra.mrb[0].mxu0 %v260
    %v542 = vpop.f32.mrb[0].mxu0
    %v543 = vadd.f32 0.0, %v542
    %v544 = vpop.f32.mrb[0].mxu0
    %545 = vmatprep.mubr.f32.mxu0 0.0
    %546 = vmatmul.mubr.f32.gmra.mrb[0].mxu0 %v261
    %v547 = vpop.f32.mrb[0].mxu0
    %v548 = vadd.f32 0.0, %v547
    %v549 = vpop.f32.mrb[0].mxu0
    %550 = vmatprep.mubr.f32.mxu0 0.0
    %551 = vmatmul.mubr.f32.gmra.mrb[0].mxu0 %v262
    %v552 = vpop.f32.mrb[0].mxu0
    %v553 = vadd.f32 0.0, %v552
    %v554 = vpop.f32.mrb[0].mxu0
    %555 = vmatprep.mubr.f32.mxu0 0.0
    %556 = vmatmul.mubr.f32.gmra.mrb[0].mxu0 %v263
    %v557 = vpop.f32.mrb[0].mxu0
    %v558 = vadd.f32 0.0, %v557
    %v559 = vpop.f32.mrb[0].mxu0
    %560 = vmatprep.mubr.f32.mxu0 0.0
    %561 = vmatmul.mubr.f32.gmra.mrb[0].mxu0 %v264
    %v562 = vpop.f32.mrb[0].mxu0
    %v563 = vadd.f32 0.0, %v562
    %v564 = vpop.f32.mrb[0].mxu0
    %565 = vmatprep.mubr.f32.mxu0 0.0
    %566 = vmatmul.mubr.f32.gmra.mrb[0].mxu0 %v265
    %v567 = vpop.f32.mrb[0].mxu0
    %v568 = vadd.f32 0.0, %v567
    %v569 = vpop.f32.mrb[0].mxu0
    %570 = vmatprep.mubr.f32.mxu0 0.0
    %571 = vmatmul.mubr.f32.gmra.mrb[0].mxu0 %v266
    %v572 = vpop.f32.mrb[0].mxu0
    %v573 = vadd.f32 0.0, %v572
    %v574 = vpop.f32.mrb[0].mxu0
    %575 = vmatprep.mubr.f32.mxu0 0.0
    %576 = vmatmul.mubr.f32.gmra.mrb[0].mxu0 %v267
    %v577 = vpop.f32.mrb[0].mxu0
    %v578 = vadd.f32 0.0, %v577
    %v579 = vpop.f32.mrb[0].mxu0
    %580 = vmatprep.mubr.f32.mxu0 0.0
    %581 = vmatmul.mubr.f32.gmra.mrb[0].mxu0 %v268
    %v582 = vpop.f32.mrb[0].mxu0
    %v583 = vadd.f32 0.0, %v582
    %v584 = vpop.f32.mrb[0].mxu0
    %585 = vmatprep.mubr.f32.mxu0 0.0
    %586 = vmatmul.mubr.f32.gmra.mrb[0].mxu0 %v269
    %v587 = vpop.f32.mrb[0].mxu0
    %v588 = vadd.f32 0.0, %v587
    %v589 = vpop.f32.mrb[0].mxu0
    %590 = vmatprep.mubr.f32.mxu0 0.0
    %591 = vmatmul.mubr.f32.gmra.mrb[0].mxu0 %v270
    %v592 = vpop.f32.mrb[0].mxu0
    %v593 = vadd.f32 0.0, %v592
    %v594 = vpop.f32.mrb[0].mxu0
    %595 = vmatprep.mubr.f32.mxu0 0.0
    %596 = vmatmul.mubr.f32.gmra.mrb[0].mxu0 %v271
    %v597 = vpop.f32.mrb[0].mxu0
    %v598 = vadd.f32 0.0, %v597
    %v599 = vpop.f32.mrb[0].mxu0
    %600 = vmatprep.mubr.f32.mxu0 0.0
    %601 = vmatmul.mubr.f32.gmra.mrb[0].mxu0 %v272
    %v602 = vpop.f32.mrb[0].mxu0
    %v603 = vadd.f32 0.0, %v602
    %v604 = vpop.f32.mrb[0].mxu0
    %605 = vmatprep.mubr.f32.mxu0 0.0
    %606 = vmatmul.mubr.f32.gmra.mrb[0].mxu0 %v273
    %v607 = vpop.f32.mrb[0].mxu0
    %v608 = vadd.f32 0.0, %v607
    %v609 = vpop.f32.mrb[0].mxu0
    %610 = vmatprep.mubr.f32.mxu0 0.0
    %611 = vmatmul.mubr.f32.gmra.mrb[0].mxu0 %v274
    %v612 = vpop.f32.mrb[0].mxu0
    %v613 = vadd.f32 0.0, %v612
    %v614 = vpop.f32.mrb[0].mxu0
    %615 = vmatprep.mubr.f32.mxu0 0.0
    %616 = vmatmul.mubr.f32.gmra.mrb[0].mxu0 %v275
    %v617 = vpop.f32.mrb[0].mxu0
    %v618 = vadd.f32 0.0, %v617
    %v619 = vpop.f32.mrb[0].mxu0
    %620 = vmatprep.mubr.f32.mxu0 0.0
    %621 = vmatmul.mubr.f32.gmra.mrb[0].mxu0 %v276
    %v622 = vpop.f32.mrb[0].mxu0
    %v623 = vadd.f32 0.0, %v622
    %v624 = vpop.f32.mrb[0].mxu0
    %625 = vmatprep.mubr.f32.mxu0 0.0
    %626 = vmatmul.mubr.f32.gmra.mrb[0].mxu0 %v277
    %v627 = vpop.f32.mrb[0].mxu0
    %v628 = vadd.f32 0.0, %v627
    %v629 = vpop.f32.mrb[0].mxu0
    %630 = vmatprep.mubr.f32.mxu0 0.0
    %631 = vmatmul.mubr.f32.gmra.mrb[0].mxu0 %v278
    %v632 = vpop.f32.mrb[0].mxu0
    %v633 = vadd.f32 0.0, %v632
    %v634 = vpop.f32.mrb[0].mxu0
    %635 = vmatprep.mubr.f32.mxu0 0.0
    %636 = vmatmul.mubr.f32.gmra.mrb[0].mxu0 %v279
    %v637 = vpop.f32.mrb[0].mxu0
    %v638 = vadd.f32 0.0, %v637
    %v639 = vpop.f32.mrb[0].mxu0
    %640 = vmatprep.mubr.f32.mxu0 0.0
    %641 = vmatmul.mubr.f32.gmra.mrb[0].mxu0 %v280
    %v642 = vpop.f32.mrb[0].mxu0
    %v643 = vadd.f32 0.0, %v642
    %v644 = vpop.f32.mrb[0].mxu0
    %645 = vmatprep.mubr.f32.mxu0 0.0
    %646 = vmatmul.mubr.f32.gmra.mrb[0].mxu0 %v281
    %v647 = vpop.f32.mrb[0].mxu0
    %v648 = vadd.f32 0.0, %v647
    %v649 = vpop.f32.mrb[0].mxu0
    %650 = vmatprep.mubr.f32.mxu0 0.0
    %651 = vmatmul.mubr.f32.gmra.mrb[0].mxu0 %v282
    %v652 = vpop.f32.mrb[0].mxu0
    %v653 = vadd.f32 0.0, %v652
    %v654 = vpop.f32.mrb[0].mxu0
    %655 = vmatprep.mubr.f32.mxu0 0.0
    %656 = vmatmul.mubr.f32.gmra.mrb[0].mxu0 %v283
    %v657 = vpop.f32.mrb[0].mxu0
    %v658 = vadd.f32 0.0, %v657
    %v659 = vpop.f32.mrb[0].mxu0
    %660 = vmatprep.mubr.f32.mxu0 0.0
    %661 = vmatmul.mubr.f32.gmra.mrb[0].mxu0 %v284
    %v662 = vpop.f32.mrb[0].mxu0
    %v663 = vadd.f32 0.0, %v662
    %v664 = vpop.f32.mrb[0].mxu0
    %665 = vmatprep.mubr.f32.mxu0 0.0
    %666 = vmatmul.mubr.f32.gmra.mrb[0].mxu0 %v285
    %v667 = vpop.f32.mrb[0].mxu0
    %v668 = vadd.f32 0.0, %v667
    %v669 = vpop.f32.mrb[0].mxu0
    %670 = vmatprep.mubr.f32.mxu0 0.0
    %671 = vmatmul.mubr.f32.gmra.mrb[0].mxu0 %v286
    %v672 = vpop.f32.mrb[0].mxu0
    %v673 = vadd.f32 0.0, %v672
    %v674 = vpop.f32.mrb[0].mxu0
    %675 = vmatprep.mubr.f32.mxu0 0.0
    %676 = vmatmul.mubr.f32.gmra.mrb[0].mxu0 %v287
    %v677 = vpop.f32.mrb[0].mxu0
    %v678 = vadd.f32 0.0, %v677
    %v679 = vpop.f32.mrb[0].mxu0
    %680 = vmatprep.mubr.f32.mxu0 0.0
    %681 = vmatmul.mubr.f32.gmra.mrb[0].mxu0 %v288
    %v682 = vpop.f32.mrb[0].mxu0
    %v683 = vadd.f32 0.0, %v682
    %v684 = vpop.f32.mrb[0].mxu0
    %685 = vmatprep.mubr.f32.mxu0 0.0
    %686 = vmatmul.mubr.f32.gmra.mrb[0].mxu0 %v289
    %v687 = vpop.f32.mrb[0].mxu0
    %v688 = vadd.f32 0.0, %v687
    %v689 = vpop.f32.mrb[0].mxu0
    %690 = vmatprep.mubr.f32.mxu0 0.0
    %691 = vmatmul.mubr.f32.gmra.mrb[0].mxu0 %v290
    %v692 = vpop.f32.mrb[0].mxu0
    %v693 = vadd.f32 0.0, %v692
    %v694 = vpop.f32.mrb[0].mxu0
    %695 = vmatprep.mubr.f32.mxu0 0.0
    %696 = vmatmul.mubr.f32.gmra.mrb[0].mxu0 %v291
    %v697 = vpop.f32.mrb[0].mxu0
    %v698 = vadd.f32 0.0, %v697
    %v699 = vpop.f32.mrb[0].mxu0
    %700 = vmatprep.mubr.f32.mxu0 0.0
    %701 = vmatmul.mubr.f32.gmra.mrb[0].mxu0 %v292
    %v702 = vpop.f32.mrb[0].mxu0
    %v703 = vadd.f32 0.0, %v702
    %v704 = vpop.f32.mrb[0].mxu0
    %705 = vmatprep.mubr.f32.mxu0 0.0
    %706 = vmatmul.mubr.f32.gmra.mrb[0].mxu0 %v293
    %v707 = vpop.f32.mrb[0].mxu0
    %v708 = vadd.f32 0.0, %v707
    %v709 = vpop.f32.mrb[0].mxu0
    %710 = vmatprep.mubr.f32.mxu0 0.0
    %711 = vmatmul.mubr.f32.gmra.mrb[0].mxu0 %v294
    %v712 = vpop.f32.mrb[0].mxu0
    %v713 = vadd.f32 0.0, %v712
    %v714 = vpop.f32.mrb[0].mxu0
    %715 = vmatprep.mubr.f32.mxu0 0.0
    %716 = vmatmul.mubr.f32.gmra.mrb[0].mxu0 %v295
    %v717 = vpop.f32.mrb[0].mxu0
    %v718 = vadd.f32 0.0, %v717
    %v719 = vpop.f32.mrb[0].mxu0
    %720 = vmatprep.mubr.f32.mxu0 0.0
    %721 = vmatmul.mubr.f32.gmra.mrb[0].mxu0 %v296
    %v722 = vpop.f32.mrb[0].mxu0
    %v723 = vadd.f32 0.0, %v722
    %v724 = vpop.f32.mrb[0].mxu0
    %725 = vmatprep.mubr.f32.mxu0 0.0
    %726 = vmatmul.mubr.f32.gmra.mrb[0].mxu0 %v297
    %v727 = vpop.f32.mrb[0].mxu0
    %v728 = vadd.f32 0.0, %v727
    %v729 = vpop.f32.mrb[0].mxu0
    %730 = vmatprep.mubr.f32.mxu0 0.0
    %731 = vmatmul.mubr.f32.gmra.mrb[0].mxu0 %v298
    %v732 = vpop.f32.mrb[0].mxu0
    %v733 = vadd.f32 0.0, %v732
    %v734 = vpop.f32.mrb[0].mxu0
    %735 = vmatprep.mubr.f32.mxu0 0.0
    %736 = vmatmul.mubr.f32.gmra.mrb[0].mxu0 %v299
    %v737 = vpop.f32.mrb[0].mxu0
    %v738 = vadd.f32 0.0, %v737
    %v739 = vpop.f32.mrb[0].mxu0
    %740 = vmatprep.mubr.f32.mxu0 0.0
    %741 = vmatmul.mubr.f32.gmra.mrb[0].mxu0 %v300
    %v742 = vpop.f32.mrb[0].mxu0
    %v743 = vadd.f32 0.0, %v742
    %v744 = vpop.f32.mrb[0].mxu0
    %745 = vmatprep.mubr.f32.mxu0 0.0
    %746 = vmatmul.mubr.f32.gmra.mrb[0].mxu0 %v301
    %v747 = vpop.f32.mrb[0].mxu0
    %v748 = vadd.f32 0.0, %v747
    %v749 = vpop.f32.mrb[0].mxu0
    %750 = vmatprep.mubr.f32.mxu0 0.0
    %751 = vmatmul.mubr.f32.gmra.mrb[0].mxu0 %v302
    %v752 = vpop.f32.mrb[0].mxu0
    %v753 = vadd.f32 0.0, %v752
    %v754 = vpop.f32.mrb[0].mxu0
    %755 = vmatprep.mubr.f32.mxu0 0.0
    %756 = vmatmul.mubr.f32.gmra.mrb[0].mxu0 %v303
    %v757 = vpop.f32.mrb[0].mxu0
    %v758 = vadd.f32 0.0, %v757
    %v759 = vpop.f32.mrb[0].mxu0
    %760 = vmatprep.mubr.f32.mxu0 0.0
    %761 = vmatmul.mubr.f32.gmra.mrb[0].mxu0 %v304
    %v762 = vpop.f32.mrb[0].mxu0
    %v763 = vadd.f32 0.0, %v762
    %v764 = vpop.f32.mrb[0].mxu0
    %765 = vmatprep.mubr.f32.mxu0 0.0
    %766 = vmatmul.mubr.f32.gmra.mrb[0].mxu0 %v305
    %v767 = vpop.f32.mrb[0].mxu0
    %v768 = vadd.f32 0.0, %v767
    %v769 = vpop.f32.mrb[0].mxu0
    %770 = vmatprep.mubr.f32.mxu0 0.0
    %771 = vmatmul.mubr.f32.gmra.mrb[0].mxu0 %v306
    %v772 = vpop.f32.mrb[0].mxu0
    %v773 = vadd.f32 0.0, %v772
    %v774 = vpop.f32.mrb[0].mxu0
    %775 = vmatprep.mubr.f32.mxu0 0.0
    %776 = vmatmul.mubr.f32.gmra.mrb[0].mxu0 %v307
    %v777 = vpop.f32.mrb[0].mxu0
    %v778 = vadd.f32 0.0, %v777
    %v779 = vpop.f32.mrb[0].mxu0
    %780 = vmatprep.mubr.f32.mxu0 0.0
    %781 = vmatmul.mubr.f32.gmra.mrb[0].mxu0 %v308
    %v782 = vpop.f32.mrb[0].mxu0
    %v783 = vadd.f32 0.0, %v782
    %v784 = vpop.f32.mrb[0].mxu0
    %785 = vmatprep.mubr.f32.mxu0 0.0
    %786 = vmatmul.mubr.f32.gmra.mrb[0].mxu0 %v309
    %v787 = vpop.f32.mrb[0].mxu0
    %v788 = vadd.f32 0.0, %v787
    %v789 = vpop.f32.mrb[0].mxu0
    %790 = vmatprep.mubr.f32.mxu0 0.0
    %791 = vmatmul.mubr.f32.gmra.mrb[0].mxu0 %v310
    %v792 = vpop.f32.mrb[0].mxu0
    %v793 = vadd.f32 0.0, %v792
    %v794 = vpop.f32.mrb[0].mxu0
    %795 = vmatprep.mubr.f32.mxu0 0.0
    %796 = vmatmul.mubr.f32.gmra.mrb[0].mxu0 %v311
    %v797 = vpop.f32.mrb[0].mxu0
    %v798 = vadd.f32 0.0, %v797
    %v799 = vpop.f32.mrb[0].mxu0
    %800 = vmatprep.mubr.f32.mxu0 0.0
    %801 = vmatmul.mubr.f32.gmra.mrb[0].mxu0 %v312
    %v802 = vpop.f32.mrb[0].mxu0
    %v803 = vadd.f32 0.0, %v802
    %v804 = vpop.f32.mrb[0].mxu0
    %805 = vmatprep.mubr.f32.mxu0 0.0
    %806 = vmatmul.mubr.f32.gmra.mrb[0].mxu0 %v313
    %v807 = vpop.f32.mrb[0].mxu0
    %v808 = vadd.f32 0.0, %v807
    %v809 = vpop.f32.mrb[0].mxu0
    %810 = vmatprep.mubr.f32.mxu0 0.0
    %811 = vmatmul.mubr.f32.gmra.mrb[0].mxu0 %v314
    %v812 = vpop.f32.mrb[0].mxu0
    %v813 = vadd.f32 0.0, %v812
    %v814 = vpop.f32.mrb[0].mxu0
    %815 = vmatprep.mubr.f32.mxu0 0.0
    %816 = vmatmul.mubr.f32.gmra.mrb[0].mxu0 %v315
    %v817 = vpop.f32.mrb[0].mxu0
    %v818 = vadd.f32 0.0, %v817
    %v819 = vpop.f32.mrb[0].mxu0
    %820 = vmatprep.mubr.f32.mxu0 0.0
    %821 = vmatmul.mubr.f32.gmra.mrb[0].mxu0 %v316
    %v822 = vpop.f32.mrb[0].mxu0
    %v823 = vadd.f32 0.0, %v822
    %v824 = vpop.f32.mrb[0].mxu0
    %825 = vmatprep.mubr.f32.mxu0 0.0
    %826 = vmatmul.mubr.f32.gmra.mrb[0].mxu0 %v317
    %v827 = vpop.f32.mrb[0].mxu0
    %v828 = vadd.f32 0.0, %v827
    %v829 = vpop.f32.mrb[0].mxu0
    %830 = vmatprep.mubr.f32.mxu0 0.0
    %831 = vmatmul.mubr.f32.gmra.mrb[0].mxu0 %v318
    %v832 = vpop.f32.mrb[0].mxu0
    %v833 = vadd.f32 0.0, %v832
    %v834 = vpop.f32.mrb[0].mxu0
    %835 = vmatprep.mubr.f32.mxu0 0.0
    %836 = vmatmul.mubr.f32.gmra.mrb[0].mxu0 %v319
    %v837 = vpop.f32.mrb[0].mxu0
    %v838 = vadd.f32 0.0, %v837
    %v839 = vpop.f32.mrb[0].mxu0
    %840 = vmatprep.mubr.f32.mxu0 0.0
    %841 = vmatmul.mubr.f32.gmra.mrb[0].mxu0 %v320
    %v842 = vpop.f32.mrb[0].mxu0
    %v843 = vadd.f32 0.0, %v842
    %v844 = vpop.f32.mrb[0].mxu0
    %845 = vmatprep.mubr.f32.mxu0 0.0
    %846 = vmatmul.mubr.f32.gmra.mrb[0].mxu0 %v321
    %v847 = vpop.f32.mrb[0].mxu0
    %v848 = vadd.f32 0.0, %v847
    %v849 = vpop.f32.mrb[0].mxu0
    %850 = vmatprep.mubr.f32.mxu0 0.0
    %851 = vmatmul.mubr.f32.gmra.mrb[0].mxu0 %v322
    %v852 = vpop.f32.mrb[0].mxu0
    %v853 = vadd.f32 0.0, %v852
    %v854 = vpop.f32.mrb[0].mxu0
    %855 = vmatprep.mubr.f32.mxu0 0.0
    %856 = vmatmul.mubr.f32.gmra.mrb[0].mxu0 %v323
    %v857 = vpop.f32.mrb[0].mxu0
    %v858 = vadd.f32 0.0, %v857
    %v859 = vpop.f32.mrb[0].mxu0
    %860 = vmatprep.mubr.f32.mxu0 0.0
    %861 = vmatmul.mubr.f32.gmra.mrb[0].mxu0 %v324
    %v862 = vpop.f32.mrb[0].mxu0
    %v863 = vadd.f32 0.0, %v862
    %v864 = vpop.f32.mrb[0].mxu0
    %865 = vmatprep.mubr.f32.mxu0 0.0
    %866 = vmatmul.mubr.f32.gmra.mrb[0].mxu0 %v325
    %v867 = vpop.f32.mrb[0].mxu0
    %v868 = vadd.f32 0.0, %v867
    %v869 = vpop.f32.mrb[0].mxu0
    %870 = vmatprep.mubr.f32.mxu0 0.0
    %871 = vmatmul.mubr.f32.gmra.mrb[0].mxu0 %v326
    %v872 = vpop.f32.mrb[0].mxu0
    %v873 = vadd.f32 0.0, %v872
    %v874 = vpop.f32.mrb[0].mxu0
    %875 = vmatprep.mubr.f32.mxu0 0.0
    %876 = vmatmul.mubr.f32.gmra.mrb[0].mxu0 %v327
    %v877 = vpop.f32.mrb[0].mxu0
    %v878 = vadd.f32 0.0, %v877
    %v879 = vpop.f32.mrb[0].mxu0
    %880 = vmatprep.mubr.f32.mxu0 0.0
    %881 = vmatmul.mubr.f32.gmra.mrb[0].mxu0 %v328
    %v882 = vpop.f32.mrb[0].mxu0
    %v883 = vadd.f32 0.0, %v882
    %v884 = vpop.f32.mrb[0].mxu0
    %885 = vmatprep.mubr.f32.mxu0 0.0
    %886 = vmatmul.mubr.f32.gmra.mrb[0].mxu0 %v329
    %v887 = vpop.f32.mrb[0].mxu0
    %v888 = vadd.f32 0.0, %v887
    %v889 = vpop.f32.mrb[0].mxu0
    %890 = vmatprep.mubr.f32.mxu0 0.0
    %891 = vmatmul.mubr.f32.gmra.mrb[0].mxu0 %v330
    %v892 = vpop.f32.mrb[0].mxu0
    %v893 = vadd.f32 0.0, %v892
    %v894 = vpop.f32.mrb[0].mxu0
    %895 = vmatprep.mubr.f32.mxu0 0.0
    %896 = vmatmul.mubr.f32.gmra.mrb[0].mxu0 %v331
    %v897 = vpop.f32.mrb[0].mxu0
    %v898 = vadd.f32 0.0, %v897
    %v899 = vpop.f32.mrb[0].mxu0
    %900 = vmatprep.mubr.f32.mxu0 0.0
    %901 = vmatmul.mubr.f32.gmra.mrb[0].mxu0 %v332
    %v902 = vpop.f32.mrb[0].mxu0
    %v903 = vadd.f32 0.0, %v902
    %v904 = vpop.f32.mrb[0].mxu0
    %905 = vmatprep.mubr.f32.mxu0 0.0
    %906 = vmatmul.mubr.f32.gmra.mrb[0].mxu0 %v333
    %v907 = vpop.f32.mrb[0].mxu0
    %v908 = vadd.f32 0.0, %v907
    %v909 = vpop.f32.mrb[0].mxu0
    %910 = vmatprep.mubr.f32.mxu0 0.0
    %911 = vmatmul.mubr.f32.gmra.mrb[0].mxu0 %v334
    %v912 = vpop.f32.mrb[0].mxu0
    %v913 = vadd.f32 0.0, %v912
    %v914 = vpop.f32.mrb[0].mxu0
    %915 = vmatprep.mubr.f32.mxu0 0.0
    %916 = vmatmul.mubr.f32.gmra.mrb[0].mxu0 %v335
    %v917 = vpop.f32.mrb[0].mxu0
    %v918 = vadd.f32 0.0, %v917
    %v919 = vpop.f32.mrb[0].mxu0
    %920 = vmatprep.mubr.f32.mxu0 0.0
    %921 = vmatmul.mubr.f32.gmra.mrb[0].mxu0 %v336
    %v922 = vpop.f32.mrb[0].mxu0
    %v923 = vadd.f32 0.0, %v922
    %v924 = vpop.f32.mrb[0].mxu0
    %925 = vmatprep.mubr.f32.mxu0 0.0
    %926 = vmatmul.mubr.f32.gmra.mrb[0].mxu0 %v337
    %v927 = vpop.f32.mrb[0].mxu0
    %v928 = vadd.f32 0.0, %v927
    %v929 = vpop.f32.mrb[0].mxu0
    %930 = vmatprep.mubr.f32.mxu0 0.0
    %931 = vmatmul.mubr.f32.gmra.mrb[0].mxu0 %v338
    %v932 = vpop.f32.mrb[0].mxu0
    %v933 = vadd.f32 0.0, %v932
    %v934 = vpop.f32.mrb[0].mxu0
    %935 = vmatprep.mubr.f32.mxu0 0.0
    %936 = vmatmul.mubr.f32.gmra.mrb[0].mxu0 %v339
    %v937 = vpop.f32.mrb[0].mxu0
    %v938 = vadd.f32 0.0, %v937
    %v939 = vpop.f32.mrb[0].mxu0
    %940 = vmatprep.mubr.f32.mxu0 0.0
    %941 = vmatmul.mubr.f32.gmra.mrb[0].mxu0 %v340
    %v942 = vpop.f32.mrb[0].mxu0
    %v943 = vadd.f32 0.0, %v942
    %v944 = vpop.f32.mrb[0].mxu0
    %945 = vmatprep.mubr.f32.mxu0 0.0
    %946 = vmatmul.mubr.f32.gmra.mrb[0].mxu0 %v341
    %v947 = vpop.f32.mrb[0].mxu0
    %v948 = vadd.f32 0.0, %v947
    %v949 = vpop.f32.mrb[0].mxu0
    %950 = vmatprep.mubr.f32.mxu0 0.0
    %951 = vmatmul.mubr.f32.gmra.mrb[0].mxu0 %v342
    %v952 = vpop.f32.mrb[0].mxu0
    %v953 = vadd.f32 0.0, %v952
    %v954 = vpop.f32.mrb[0].mxu0
    %955 = vmatprep.mubr.f32.mxu0 0.0
    %956 = vmatmul.mubr.f32.gmra.mrb[0].mxu0 %v343
    %v957 = vpop.f32.mrb[0].mxu0
    %v958 = vadd.f32 0.0, %v957
    %v959 = vpop.f32.mrb[0].mxu0
    %960 = vmatprep.mubr.f32.mxu0 0.0
    %961 = vmatmul.mubr.f32.gmra.mrb[0].mxu0 %v344
    %v962 = vpop.f32.mrb[0].mxu0
    %v963 = vadd.f32 0.0, %v962
    %v964 = vpop.f32.mrb[0].mxu0
    %965 = vmatprep.mubr.f32.mxu0 0.0
    %966 = vmatmul.mubr.f32.gmra.mrb[0].mxu0 %v345
    %v967 = vpop.f32.mrb[0].mxu0
    %v968 = vadd.f32 0.0, %v967
    %v969 = vpop.f32.mrb[0].mxu0
    %970 = vmatprep.mubr.f32.mxu0 0.0
    %971 = vmatmul.mubr.f32.gmra.mrb[0].mxu0 %v346
    %v972 = vpop.f32.mrb[0].mxu0
    %v973 = vadd.f32 0.0, %v972
    %v974 = vpop.f32.mrb[0].mxu0
    %975 = vmatprep.mubr.f32.mxu0 0.0
    %976 = vmatmul.mubr.f32.gmra.mrb[0].mxu0 %v347
    %v977 = vpop.f32.mrb[0].mxu0
    %v978 = vadd.f32 0.0, %v977
    %v979 = vpop.f32.mrb[0].mxu0
    %980 = vmatprep.mubr.f32.mxu0 0.0
    %981 = vmatmul.mubr.f32.gmra.mrb[0].mxu0 %v348
    %v982 = vpop.f32.mrb[0].mxu0
    %v983 = vadd.f32 0.0, %v982
    %v984 = vpop.f32.mrb[0].mxu0
    %985 = vmatprep.mubr.f32.mxu0 0.0
    %986 = vmatmul.mubr.f32.gmra.mrb[0].mxu0 %v349
    %v987 = vpop.f32.mrb[0].mxu0
    %v988 = vadd.f32 0.0, %v987
    %v989 = vpop.f32.mrb[0].mxu0
    %990 = vmatprep.mubr.f32.mxu0 0.0
    %991 = vmatmul.mubr.f32.gmra.mrb[0].mxu0 %v350
    %v992 = vpop.f32.mrb[0].mxu0
    %v993 = vadd.f32 0.0, %v992
    %v994 = vpop.f32.mrb[0].mxu0
    %995 = vmatprep.mubr.f32.mxu0 0.0
    %996 = vmatmul.mubr.f32.gmra.mrb[0].mxu0 %v351
    %v997 = vpop.f32.mrb[0].mxu0
    %v998 = vadd.f32 0.0, %v997
    %v999 = vpop.f32.mrb[0].mxu0
    %1000 = vmatprep.mubr.f32.mxu0 0.0
    %1001 = vmatmul.mubr.f32.gmra.mrb[0].mxu0 %v352
    %v1002 = vpop.f32.mrb[0].mxu0
    %v1003 = vadd.f32 0.0, %v1002
    %v1004 = vpop.f32.mrb[0].mxu0
    %1005 = vmatprep.mubr.f32.mxu0 0.0
    %1006 = vmatmul.mubr.f32.gmra.mrb[0].mxu0 %v353
    %v1007 = vpop.f32.mrb[0].mxu0
    %v1008 = vadd.f32 0.0, %v1007
    %v1009 = vpop.f32.mrb[0].mxu0
    %1010 = vmatprep.mubr.f32.mxu0 0.0
    %1011 = vmatmul.mubr.f32.gmra.mrb[0].mxu0 %v354
    %v1012 = vpop.f32.mrb[0].mxu0
    %v1013 = vadd.f32 0.0, %v1012
    %v1014 = vpop.f32.mrb[0].mxu0
    %1015 = vmatprep.mubr.f32.mxu0 0.0
    %1016 = vmatmul.mubr.f32.gmra.mrb[0].mxu0 %v355
    %v1017 = vpop.f32.mrb[0].mxu0
    %v1018 = vadd.f32 0.0, %v1017
    %v1019 = vpop.f32.mrb[0].mxu0
    %1020 = vmatprep.mubr.f32.mxu0 0.0
    %1021 = vmatmul.mubr.f32.gmra.mrb[0].mxu0 %v356
    %v1022 = vpop.f32.mrb[0].mxu0
    %v1023 = vadd.f32 0.0, %v1022
    %v1024 = vpop.f32.mrb[0].mxu0
    %1025 = vmatprep.mubr.f32.mxu0 0.0
    %1026 = vmatmul.mubr.f32.gmra.mrb[0].mxu0 %v357
    %v1027 = vpop.f32.mrb[0].mxu0
    %v1028 = vadd.f32 0.0, %v1027
    %v1029 = vpop.f32.mrb[0].mxu0
    %1030 = vmatprep.mubr.f32.mxu0 0.0
    %1031 = vmatmul.mubr.f32.gmra.mrb[0].mxu0 %v358
    %v1032 = vpop.f32.mrb[0].mxu0
    %v1033 = vadd.f32 0.0, %v1032
    %v1034 = vpop.f32.mrb[0].mxu0
    %1035 = vmatprep.mubr.f32.mxu0 0.0
    %1036 = vmatmul.mubr.f32.gmra.mrb[0].mxu0 %v359
    %v1037 = vpop.f32.mrb[0].mxu0
    %v1038 = vadd.f32 0.0, %v1037
    %v1039 = vpop.f32.mrb[0].mxu0
    %1040 = vmatprep.mubr.f32.mxu0 0.0
    %1041 = vmatmul.mubr.f32.gmra.mrb[0].mxu0 %v360
    %v1042 = vpop.f32.mrb[0].mxu0
    %v1043 = vadd.f32 0.0, %v1042
    %v1044 = vpop.f32.mrb[0].mxu0
    %1045 = vmatprep.mubr.f32.mxu0 0.0
    %1046 = vmatmul.mubr.f32.gmra.mrb[0].mxu0 %v361
    %v1047 = vpop.f32.mrb[0].mxu0
    %v1048 = vadd.f32 0.0, %v1047
    %v1049 = vpop.f32.mrb[0].mxu0
    %1050 = vmatprep.mubr.f32.mxu0 0.0
    %1051 = vmatmul.mubr.f32.gmra.mrb[0].mxu0 %v362
    %v1052 = vpop.f32.mrb[0].mxu0
    %v1053 = vadd.f32 0.0, %v1052
    %v1054 = vpop.f32.mrb[0].mxu0
    %1055 = vmatprep.mubr.f32.mxu0 0.0
    %1056 = vmatmul.mubr.f32.gmra.mrb[0].mxu0 %v363
    %v1057 = vpop.f32.mrb[0].mxu0
    %v1058 = vadd.f32 0.0, %v1057
    %v1059 = vpop.f32.mrb[0].mxu0
    %1060 = vmatprep.mubr.f32.mxu0 0.0
    %1061 = vmatmul.mubr.f32.gmra.mrb[0].mxu0 %v364
    %v1062 = vpop.f32.mrb[0].mxu0
    %v1063 = vadd.f32 0.0, %v1062
    %v1064 = vpop.f32.mrb[0].mxu0
    %1065 = vmatprep.mubr.f32.mxu0 0.0
    %1066 = vmatmul.mubr.f32.gmra.mrb[0].mxu0 %v365
    %v1067 = vpop.f32.mrb[0].mxu0
    %v1068 = vadd.f32 0.0, %v1067
    %v1069 = vpop.f32.mrb[0].mxu0
    %1070 = vdwg.mxu0
    %v1071 = vlaneseq
    %v1072 = vshrl.u32 %v1071, 7
    %v1073 = vsub.s32 0, %v1072
    %v1074 = vrot.slane %v194, %v1073
    %v1075 = vlaneseq
    %v1076 = vshrl.u32 %v1075, 7
    %v1077 = vsub.s32 0, %v1076
    %v1078 = vrot.slane %v208, %v1077
    %v1079 = vlaneseq
    %v1080 = vshrl.u32 %v1079, 7
    %v1081 = vsub.s32 0, %v1080
    %v1082 = vrot.slane %v216, %v1081
    %v1083 = vlaneseq
    %v1084 = vshrl.u32 %v1083, 7
    %v1085 = vsub.s32 0, %v1084
    %v1086 = vrot.slane %v218, %v1085
    %v1087 = vlaneseq
    %v1088 = vshrl.u32 %v1087, 7
    %v1089 = vsub.s32 0, %v1088
    %v1090 = vrot.slane %v201, %v1089
    %v1091 = vlaneseq
    %v1092 = vshrl.u32 %v1091, 7
    %v1093 = vsub.s32 0, %v1092
    %v1094 = vrot.slane %v215, %v1093
    %v1095 = vlaneseq
    %v1096 = vshrl.u32 %v1095, 7
    %v1097 = vsub.s32 0, %v1096
    %v1098 = vrot.slane %v217, %v1097
    %v1099 = vlaneseq
    %v1100 = vshrl.u32 %v1099, 7
    %v1101 = vsub.s32 0, %v1100
    %v1102 = vrot.slane %v219, %v1101
    %v1111 = vadd.f32 %v433, %v1074
    %v1112 = vadd.f32 %v438, %v1074
    %v1113 = vadd.f32 %v443, %v1074
    %v1114 = vadd.f32 %v448, %v1074
    %v1115 = vadd.f32 %v453, %v1074
    %v1116 = vadd.f32 %v458, %v1074
    %v1117 = vadd.f32 %v463, %v1074
    %v1118 = vadd.f32 %v468, %v1074
    %v1119 = vadd.f32 %v473, %v1074
    %v1120 = vadd.f32 %v478, %v1074
    %v1121 = vadd.f32 %v483, %v1074
    %v1122 = vadd.f32 %v488, %v1074
    %v1123 = vadd.f32 %v493, %v1074
    %v1124 = vadd.f32 %v498, %v1074
    %v1125 = vadd.f32 %v503, %v1074
    %v1126 = vadd.f32 %v508, %v1074
    %v1127 = vadd.f32 %v513, %v1078
    %v1128 = vadd.f32 %v518, %v1078
    %v1129 = vadd.f32 %v523, %v1078
    %v1130 = vadd.f32 %v528, %v1078
    %v1131 = vadd.f32 %v533, %v1078
    %v1132 = vadd.f32 %v538, %v1078
    %v1133 = vadd.f32 %v543, %v1078
    %v1134 = vadd.f32 %v548, %v1078
    %v1135 = vadd.f32 %v553, %v1078
    %v1136 = vadd.f32 %v558, %v1078
    %v1137 = vadd.f32 %v563, %v1078
    %v1138 = vadd.f32 %v568, %v1078
    %v1139 = vadd.f32 %v573, %v1078
    %v1140 = vadd.f32 %v578, %v1078
    %v1141 = vadd.f32 %v583, %v1078
    %v1142 = vadd.f32 %v588, %v1078
    %v1143 = vadd.f32 %v593, %v1082
    %v1144 = vadd.f32 %v598, %v1082
    %v1145 = vadd.f32 %v603, %v1082
    %v1146 = vadd.f32 %v608, %v1082
    %v1147 = vadd.f32 %v613, %v1082
    %v1148 = vadd.f32 %v618, %v1082
    %v1149 = vadd.f32 %v623, %v1082
    %v1150 = vadd.f32 %v628, %v1082
    %v1151 = vadd.f32 %v633, %v1082
    %v1152 = vadd.f32 %v638, %v1082
    %v1153 = vadd.f32 %v643, %v1082
    %v1154 = vadd.f32 %v648, %v1082
    %v1155 = vadd.f32 %v653, %v1082
    %v1156 = vadd.f32 %v658, %v1082
    %v1157 = vadd.f32 %v663, %v1082
    %v1158 = vadd.f32 %v668, %v1082
    %v1159 = vadd.f32 %v673, %v1086
    %v1160 = vadd.f32 %v678, %v1086
    %v1161 = vadd.f32 %v683, %v1086
    %v1162 = vadd.f32 %v688, %v1086
    %v1163 = vadd.f32 %v693, %v1086
    %v1164 = vadd.f32 %v698, %v1086
    %v1165 = vadd.f32 %v703, %v1086
    %v1166 = vadd.f32 %v708, %v1086
    %v1167 = vadd.f32 %v713, %v1086
    %v1168 = vadd.f32 %v718, %v1086
    %v1169 = vadd.f32 %v723, %v1086
    %v1170 = vadd.f32 %v728, %v1086
    %v1171 = vadd.f32 %v733, %v1086
    %v1172 = vadd.f32 %v738, %v1086
    %v1173 = vadd.f32 %v743, %v1086
    %v1174 = vadd.f32 %v748, %v1086
    %v1175 = vadd.f32 %v753, %v1090
    %v1176 = vadd.f32 %v758, %v1090
    %v1177 = vadd.f32 %v763, %v1090
    %v1178 = vadd.f32 %v768, %v1090
    %v1179 = vadd.f32 %v773, %v1090
    %v1180 = vadd.f32 %v778, %v1090
    %v1181 = vadd.f32 %v783, %v1090
    %v1182 = vadd.f32 %v788, %v1090
    %v1183 = vadd.f32 %v793, %v1090
    %v1184 = vadd.f32 %v798, %v1090
    %v1185 = vadd.f32 %v803, %v1090
    %v1186 = vadd.f32 %v808, %v1090
    %v1187 = vadd.f32 %v813, %v1090
    %v1188 = vadd.f32 %v818, %v1090
    %v1189 = vadd.f32 %v823, %v1090
    %v1190 = vadd.f32 %v828, %v1090
    %v1191 = vadd.f32 %v833, %v1094
    %v1192 = vadd.f32 %v838, %v1094
    %v1193 = vadd.f32 %v843, %v1094
    %v1194 = vadd.f32 %v848, %v1094
    %v1195 = vadd.f32 %v853, %v1094
    %v1196 = vadd.f32 %v858, %v1094
    %v1197 = vadd.f32 %v863, %v1094
    %v1198 = vadd.f32 %v868, %v1094
    %v1199 = vadd.f32 %v873, %v1094
    %v1200 = vadd.f32 %v878, %v1094
    %v1201 = vadd.f32 %v883, %v1094
    %v1202 = vadd.f32 %v888, %v1094
    %v1203 = vadd.f32 %v893, %v1094
    %v1204 = vadd.f32 %v898, %v1094
    %v1205 = vadd.f32 %v903, %v1094
    %v1206 = vadd.f32 %v908, %v1094
    %v1207 = vadd.f32 %v913, %v1098
    %v1208 = vadd.f32 %v918, %v1098
    %v1209 = vadd.f32 %v923, %v1098
    %v1210 = vadd.f32 %v928, %v1098
    %v1211 = vadd.f32 %v933, %v1098
    %v1212 = vadd.f32 %v938, %v1098
    %v1213 = vadd.f32 %v943, %v1098
    %v1214 = vadd.f32 %v948, %v1098
    %v1215 = vadd.f32 %v953, %v1098
    %v1216 = vadd.f32 %v958, %v1098
    %v1217 = vadd.f32 %v963, %v1098
    %v1218 = vadd.f32 %v968, %v1098
    %v1219 = vadd.f32 %v973, %v1098
    %v1220 = vadd.f32 %v978, %v1098
    %v1221 = vadd.f32 %v983, %v1098
    %v1222 = vadd.f32 %v988, %v1098
    %v1223 = vadd.f32 %v993, %v1102
    %v1224 = vadd.f32 %v998, %v1102
    %v1225 = vadd.f32 %v1003, %v1102
    %v1226 = vadd.f32 %v1008, %v1102
    %v1227 = vadd.f32 %v1013, %v1102
    %v1228 = vadd.f32 %v1018, %v1102
    %v1229 = vadd.f32 %v1023, %v1102
    %v1230 = vadd.f32 %v1028, %v1102
    %v1231 = vadd.f32 %v1033, %v1102
    %v1232 = vadd.f32 %v1038, %v1102
    %v1233 = vadd.f32 %v1043, %v1102
    %v1234 = vadd.f32 %v1048, %v1102
    %v1235 = vadd.f32 %v1053, %v1102
    %v1236 = vadd.f32 %v1058, %v1102
    %v1237 = vadd.f32 %v1063, %v1102
    %v1238 = vadd.f32 %v1068, %v1102
    %v1239 = vtanh.pop %v1111
    %v1240 = vtanh.pop %v1112
    %v1241 = vtanh.pop %v1113
    %v1242 = vtanh.pop %v1114
    %v1243 = vtanh.pop %v1115
    %v1244 = vtanh.pop %v1116
    %v1245 = vtanh.pop %v1117
    %v1246 = vtanh.pop %v1118
    %v1247 = vtanh.pop %v1119
    %v1248 = vtanh.pop %v1120
    %v1249 = vtanh.pop %v1121
    %v1250 = vtanh.pop %v1122
    %v1251 = vtanh.pop %v1123
    %v1252 = vtanh.pop %v1124
    %v1253 = vtanh.pop %v1125
    %v1254 = vtanh.pop %v1126
    %v1255 = vtanh.pop %v1127
    %v1256 = vtanh.pop %v1128
    %v1257 = vtanh.pop %v1129
    %v1258 = vtanh.pop %v1130
    %v1259 = vtanh.pop %v1131
    %v1260 = vtanh.pop %v1132
    %v1261 = vtanh.pop %v1133
    %v1262 = vtanh.pop %v1134
    %v1263 = vtanh.pop %v1135
    %v1264 = vtanh.pop %v1136
    %v1265 = vtanh.pop %v1137
    %v1266 = vtanh.pop %v1138
    %v1267 = vtanh.pop %v1139
    %v1268 = vtanh.pop %v1140
    %v1269 = vtanh.pop %v1141
    %v1270 = vtanh.pop %v1142
    %v1271 = vtanh.pop %v1143
    %v1272 = vtanh.pop %v1144
    %v1273 = vtanh.pop %v1145
    %v1274 = vtanh.pop %v1146
    %v1275 = vtanh.pop %v1147
    %v1276 = vtanh.pop %v1148
    %v1277 = vtanh.pop %v1149
    %v1278 = vtanh.pop %v1150
    %v1279 = vtanh.pop %v1151
    %v1280 = vtanh.pop %v1152
    %v1281 = vtanh.pop %v1153
    %v1282 = vtanh.pop %v1154
    %v1283 = vtanh.pop %v1155
    %v1284 = vtanh.pop %v1156
    %v1285 = vtanh.pop %v1157
    %v1286 = vtanh.pop %v1158
    %v1287 = vtanh.pop %v1159
    %v1288 = vtanh.pop %v1160
    %v1289 = vtanh.pop %v1161
    %v1290 = vtanh.pop %v1162
    %v1291 = vtanh.pop %v1163
    %v1292 = vtanh.pop %v1164
    %v1293 = vtanh.pop %v1165
    %v1294 = vtanh.pop %v1166
    %v1295 = vtanh.pop %v1167
    %v1296 = vtanh.pop %v1168
    %v1297 = vtanh.pop %v1169
    %v1298 = vtanh.pop %v1170
    %v1299 = vtanh.pop %v1171
    %v1300 = vtanh.pop %v1172
    %v1301 = vtanh.pop %v1173
    %v1302 = vtanh.pop %v1174
    %v1303 = vtanh.pop %v1175
    %v1304 = vtanh.pop %v1176
    %v1305 = vtanh.pop %v1177
    %v1306 = vtanh.pop %v1178
    %v1307 = vtanh.pop %v1179
    %v1308 = vtanh.pop %v1180
    %v1309 = vtanh.pop %v1181
    %v1310 = vtanh.pop %v1182
    %v1311 = vtanh.pop %v1183
    %v1312 = vtanh.pop %v1184
    %v1313 = vtanh.pop %v1185
    %v1314 = vtanh.pop %v1186
    %v1315 = vtanh.pop %v1187
    %v1316 = vtanh.pop %v1188
    %v1317 = vtanh.pop %v1189
    %v1318 = vtanh.pop %v1190
    %v1319 = vtanh.pop %v1191
    %v1320 = vtanh.pop %v1192
    %v1321 = vtanh.pop %v1193
    %v1322 = vtanh.pop %v1194
    %v1323 = vtanh.pop %v1195
    %v1324 = vtanh.pop %v1196
    %v1325 = vtanh.pop %v1197
    %v1326 = vtanh.pop %v1198
    %v1327 = vtanh.pop %v1199
    %v1328 = vtanh.pop %v1200
    %v1329 = vtanh.pop %v1201
    %v1330 = vtanh.pop %v1202
    %v1331 = vtanh.pop %v1203
    %v1332 = vtanh.pop %v1204
    %v1333 = vtanh.pop %v1205
    %v1334 = vtanh.pop %v1206
    %v1335 = vtanh.pop %v1207
    %v1336 = vtanh.pop %v1208
    %v1337 = vtanh.pop %v1209
    %v1338 = vtanh.pop %v1210
    %v1339 = vtanh.pop %v1211
    %v1340 = vtanh.pop %v1212
    %v1341 = vtanh.pop %v1213
    %v1342 = vtanh.pop %v1214
    %v1343 = vtanh.pop %v1215
    %v1344 = vtanh.pop %v1216
    %v1345 = vtanh.pop %v1217
    %v1346 = vtanh.pop %v1218
    %v1347 = vtanh.pop %v1219
    %v1348 = vtanh.pop %v1220
    %v1349 = vtanh.pop %v1221
    %v1350 = vtanh.pop %v1222
    %v1351 = vtanh.pop %v1223
    %v1352 = vtanh.pop %v1224
    %v1353 = vtanh.pop %v1225
    %v1354 = vtanh.pop %v1226
    %v1355 = vtanh.pop %v1227
    %v1356 = vtanh.pop %v1228
    %v1357 = vtanh.pop %v1229
    %v1358 = vtanh.pop %v1230
    %v1359 = vtanh.pop %v1231
    %v1360 = vtanh.pop %v1232
    %v1361 = vtanh.pop %v1233
    %v1362 = vtanh.pop %v1234
    %v1363 = vtanh.pop %v1235
    %v1364 = vtanh.pop %v1236
    %v1365 = vtanh.pop %v1237
    %v1366 = vtanh.pop %v1238
    %v1368 = vlaneseq
    %v1369 = vshrl.u32 %v1368, 7
    %v1370 = vsub.s32 0, %v1369
    %v1371 = vrot.slane %v220, %v1370
    %v1373 = vmul.f32 %v1239, %v1371
    %v1374 = vmul.f32 %v1240, %v1371
    %v1375 = vmul.f32 %v1241, %v1371
    %v1376 = vmul.f32 %v1242, %v1371
    %v1377 = vmul.f32 %v1243, %v1371
    %v1378 = vmul.f32 %v1244, %v1371
    %v1379 = vmul.f32 %v1245, %v1371
    %v1380 = vmul.f32 %v1246, %v1371
    %v1381 = vmul.f32 %v1247, %v1371
    %v1382 = vmul.f32 %v1248, %v1371
    %v1383 = vmul.f32 %v1249, %v1371
    %v1384 = vmul.f32 %v1250, %v1371
    %v1385 = vmul.f32 %v1251, %v1371
    %v1386 = vmul.f32 %v1252, %v1371
    %v1387 = vmul.f32 %v1253, %v1371
    %v1388 = vmul.f32 %v1254, %v1371
    %v1389 = vmul.f32 %v1255, %v1371
    %v1390 = vmul.f32 %v1256, %v1371
    %v1391 = vmul.f32 %v1257, %v1371
    %v1392 = vmul.f32 %v1258, %v1371
    %v1393 = vmul.f32 %v1259, %v1371
    %v1394 = vmul.f32 %v1260, %v1371
    %v1395 = vmul.f32 %v1261, %v1371
    %v1396 = vmul.f32 %v1262, %v1371
    %v1397 = vmul.f32 %v1263, %v1371
    %v1398 = vmul.f32 %v1264, %v1371
    %v1399 = vmul.f32 %v1265, %v1371
    %v1400 = vmul.f32 %v1266, %v1371
    %v1401 = vmul.f32 %v1267, %v1371
    %v1402 = vmul.f32 %v1268, %v1371
    %v1403 = vmul.f32 %v1269, %v1371
    %v1404 = vmul.f32 %v1270, %v1371
    %v1405 = vmul.f32 %v1271, %v1371
    %v1406 = vmul.f32 %v1272, %v1371
    %v1407 = vmul.f32 %v1273, %v1371
    %v1408 = vmul.f32 %v1274, %v1371
    %v1409 = vmul.f32 %v1275, %v1371
    %v1410 = vmul.f32 %v1276, %v1371
    %v1411 = vmul.f32 %v1277, %v1371
    %v1412 = vmul.f32 %v1278, %v1371
    %v1413 = vmul.f32 %v1279, %v1371
    %v1414 = vmul.f32 %v1280, %v1371
    %v1415 = vmul.f32 %v1281, %v1371
    %v1416 = vmul.f32 %v1282, %v1371
    %v1417 = vmul.f32 %v1283, %v1371
    %v1418 = vmul.f32 %v1284, %v1371
    %v1419 = vmul.f32 %v1285, %v1371
    %v1420 = vmul.f32 %v1286, %v1371
    %v1421 = vmul.f32 %v1287, %v1371
    %v1422 = vmul.f32 %v1288, %v1371
    %v1423 = vmul.f32 %v1289, %v1371
    %v1424 = vmul.f32 %v1290, %v1371
    %v1425 = vmul.f32 %v1291, %v1371
    %v1426 = vmul.f32 %v1292, %v1371
    %v1427 = vmul.f32 %v1293, %v1371
    %v1428 = vmul.f32 %v1294, %v1371
    %v1429 = vmul.f32 %v1295, %v1371
    %v1430 = vmul.f32 %v1296, %v1371
    %v1431 = vmul.f32 %v1297, %v1371
    %v1432 = vmul.f32 %v1298, %v1371
    %v1433 = vmul.f32 %v1299, %v1371
    %v1434 = vmul.f32 %v1300, %v1371
    %v1435 = vmul.f32 %v1301, %v1371
    %v1436 = vmul.f32 %v1302, %v1371
    %v1437 = vmul.f32 %v1303, %v1371
    %v1438 = vmul.f32 %v1304, %v1371
    %v1439 = vmul.f32 %v1305, %v1371
    %v1440 = vmul.f32 %v1306, %v1371
    %v1441 = vmul.f32 %v1307, %v1371
    %v1442 = vmul.f32 %v1308, %v1371
    %v1443 = vmul.f32 %v1309, %v1371
    %v1444 = vmul.f32 %v1310, %v1371
    %v1445 = vmul.f32 %v1311, %v1371
    %v1446 = vmul.f32 %v1312, %v1371
    %v1447 = vmul.f32 %v1313, %v1371
    %v1448 = vmul.f32 %v1314, %v1371
    %v1449 = vmul.f32 %v1315, %v1371
    %v1450 = vmul.f32 %v1316, %v1371
    %v1451 = vmul.f32 %v1317, %v1371
    %v1452 = vmul.f32 %v1318, %v1371
    %v1453 = vmul.f32 %v1319, %v1371
    %v1454 = vmul.f32 %v1320, %v1371
    %v1455 = vmul.f32 %v1321, %v1371
    %v1456 = vmul.f32 %v1322, %v1371
    %v1457 = vmul.f32 %v1323, %v1371
    %v1458 = vmul.f32 %v1324, %v1371
    %v1459 = vmul.f32 %v1325, %v1371
    %v1460 = vmul.f32 %v1326, %v1371
    %v1461 = vmul.f32 %v1327, %v1371
    %v1462 = vmul.f32 %v1328, %v1371
    %v1463 = vmul.f32 %v1329, %v1371
    %v1464 = vmul.f32 %v1330, %v1371
    %v1465 = vmul.f32 %v1331, %v1371
    %v1466 = vmul.f32 %v1332, %v1371
    %v1467 = vmul.f32 %v1333, %v1371
    %v1468 = vmul.f32 %v1334, %v1371
    %v1469 = vmul.f32 %v1335, %v1371
    %v1470 = vmul.f32 %v1336, %v1371
    %v1471 = vmul.f32 %v1337, %v1371
    %v1472 = vmul.f32 %v1338, %v1371
    %v1473 = vmul.f32 %v1339, %v1371
    %v1474 = vmul.f32 %v1340, %v1371
    %v1475 = vmul.f32 %v1341, %v1371
    %v1476 = vmul.f32 %v1342, %v1371
    %v1477 = vmul.f32 %v1343, %v1371
    %v1478 = vmul.f32 %v1344, %v1371
    %v1479 = vmul.f32 %v1345, %v1371
    %v1480 = vmul.f32 %v1346, %v1371
    %v1481 = vmul.f32 %v1347, %v1371
    %v1482 = vmul.f32 %v1348, %v1371
    %v1483 = vmul.f32 %v1349, %v1371
    %v1484 = vmul.f32 %v1350, %v1371
    %v1485 = vmul.f32 %v1351, %v1371
    %v1486 = vmul.f32 %v1352, %v1371
    %v1487 = vmul.f32 %v1353, %v1371
    %v1488 = vmul.f32 %v1354, %v1371
    %v1489 = vmul.f32 %v1355, %v1371
    %v1490 = vmul.f32 %v1356, %v1371
    %v1491 = vmul.f32 %v1357, %v1371
    %v1492 = vmul.f32 %v1358, %v1371
    %v1493 = vmul.f32 %v1359, %v1371
    %v1494 = vmul.f32 %v1360, %v1371
    %v1495 = vmul.f32 %v1361, %v1371
    %v1496 = vmul.f32 %v1362, %v1371
    %v1497 = vmul.f32 %v1363, %v1371
    %v1498 = vmul.f32 %v1364, %v1371
    %v1499 = vmul.f32 %v1365, %v1371
    %v1500 = vmul.f32 %v1366, %v1371
    %1501 = vadd.xlane.f32.xlu0 %v1373
    %v1502 = vpop.xlane.xlu0 %1501
    %1503 = vadd.xlane.f32.xlu0 %v1374
    %v1504 = vpop.xlane.xlu0 %1503
    %1505 = vadd.xlane.f32.xlu0 %v1375
    %v1506 = vpop.xlane.xlu0 %1505
    %1507 = vadd.xlane.f32.xlu0 %v1376
    %v1508 = vpop.xlane.xlu0 %1507
    %1509 = vadd.xlane.f32.xlu0 %v1377
    %v1510 = vpop.xlane.xlu0 %1509
    %1511 = vadd.xlane.f32.xlu0 %v1378
    %v1512 = vpop.xlane.xlu0 %1511
    %1513 = vadd.xlane.f32.xlu0 %v1379
    %v1514 = vpop.xlane.xlu0 %1513
    %1515 = vadd.xlane.f32.xlu0 %v1380
    %v1516 = vpop.xlane.xlu0 %1515
    %1517 = vadd.xlane.f32.xlu0 %v1381
    %v1518 = vpop.xlane.xlu0 %1517
    %1519 = vadd.xlane.f32.xlu0 %v1382
    %v1520 = vpop.xlane.xlu0 %1519
    %1521 = vadd.xlane.f32.xlu0 %v1383
    %v1522 = vpop.xlane.xlu0 %1521
    %1523 = vadd.xlane.f32.xlu0 %v1384
    %v1524 = vpop.xlane.xlu0 %1523
    %1525 = vadd.xlane.f32.xlu0 %v1385
    %v1526 = vpop.xlane.xlu0 %1525
    %1527 = vadd.xlane.f32.xlu0 %v1386
    %v1528 = vpop.xlane.xlu0 %1527
    %1529 = vadd.xlane.f32.xlu0 %v1387
    %v1530 = vpop.xlane.xlu0 %1529
    %1531 = vadd.xlane.f32.xlu0 %v1388
    %v1532 = vpop.xlane.xlu0 %1531
    %1533 = vadd.xlane.f32.xlu0 %v1389
    %v1534 = vpop.xlane.xlu0 %1533
    %1535 = vadd.xlane.f32.xlu0 %v1390
    %v1536 = vpop.xlane.xlu0 %1535
    %1537 = vadd.xlane.f32.xlu0 %v1391
    %v1538 = vpop.xlane.xlu0 %1537
    %1539 = vadd.xlane.f32.xlu0 %v1392
    %v1540 = vpop.xlane.xlu0 %1539
    %1541 = vadd.xlane.f32.xlu0 %v1393
    %v1542 = vpop.xlane.xlu0 %1541
    %1543 = vadd.xlane.f32.xlu0 %v1394
    %v1544 = vpop.xlane.xlu0 %1543
    %1545 = vadd.xlane.f32.xlu0 %v1395
    %v1546 = vpop.xlane.xlu0 %1545
    %1547 = vadd.xlane.f32.xlu0 %v1396
    %v1548 = vpop.xlane.xlu0 %1547
    %1549 = vadd.xlane.f32.xlu0 %v1397
    %v1550 = vpop.xlane.xlu0 %1549
    %1551 = vadd.xlane.f32.xlu0 %v1398
    %v1552 = vpop.xlane.xlu0 %1551
    %1553 = vadd.xlane.f32.xlu0 %v1399
    %v1554 = vpop.xlane.xlu0 %1553
    %1555 = vadd.xlane.f32.xlu0 %v1400
    %v1556 = vpop.xlane.xlu0 %1555
    %1557 = vadd.xlane.f32.xlu0 %v1401
    %v1558 = vpop.xlane.xlu0 %1557
    %1559 = vadd.xlane.f32.xlu0 %v1402
    %v1560 = vpop.xlane.xlu0 %1559
    %1561 = vadd.xlane.f32.xlu0 %v1403
    %v1562 = vpop.xlane.xlu0 %1561
    %1563 = vadd.xlane.f32.xlu0 %v1404
    %v1564 = vpop.xlane.xlu0 %1563
    %1565 = vadd.xlane.f32.xlu0 %v1405
    %v1566 = vpop.xlane.xlu0 %1565
    %1567 = vadd.xlane.f32.xlu0 %v1406
    %v1568 = vpop.xlane.xlu0 %1567
    %1569 = vadd.xlane.f32.xlu0 %v1407
    %v1570 = vpop.xlane.xlu0 %1569
    %1571 = vadd.xlane.f32.xlu0 %v1408
    %v1572 = vpop.xlane.xlu0 %1571
    %1573 = vadd.xlane.f32.xlu0 %v1409
    %v1574 = vpop.xlane.xlu0 %1573
    %1575 = vadd.xlane.f32.xlu0 %v1410
    %v1576 = vpop.xlane.xlu0 %1575
    %1577 = vadd.xlane.f32.xlu0 %v1411
    %v1578 = vpop.xlane.xlu0 %1577
    %1579 = vadd.xlane.f32.xlu0 %v1412
    %v1580 = vpop.xlane.xlu0 %1579
    %1581 = vadd.xlane.f32.xlu0 %v1413
    %v1582 = vpop.xlane.xlu0 %1581
    %1583 = vadd.xlane.f32.xlu0 %v1414
    %v1584 = vpop.xlane.xlu0 %1583
    %1585 = vadd.xlane.f32.xlu0 %v1415
    %v1586 = vpop.xlane.xlu0 %1585
    %1587 = vadd.xlane.f32.xlu0 %v1416
    %v1588 = vpop.xlane.xlu0 %1587
    %1589 = vadd.xlane.f32.xlu0 %v1417
    %v1590 = vpop.xlane.xlu0 %1589
    %1591 = vadd.xlane.f32.xlu0 %v1418
    %v1592 = vpop.xlane.xlu0 %1591
    %1593 = vadd.xlane.f32.xlu0 %v1419
    %v1594 = vpop.xlane.xlu0 %1593
    %1595 = vadd.xlane.f32.xlu0 %v1420
    %v1596 = vpop.xlane.xlu0 %1595
    %1597 = vadd.xlane.f32.xlu0 %v1421
    %v1598 = vpop.xlane.xlu0 %1597
    %1599 = vadd.xlane.f32.xlu0 %v1422
    %v1600 = vpop.xlane.xlu0 %1599
    %1601 = vadd.xlane.f32.xlu0 %v1423
    %v1602 = vpop.xlane.xlu0 %1601
    %1603 = vadd.xlane.f32.xlu0 %v1424
    %v1604 = vpop.xlane.xlu0 %1603
    %1605 = vadd.xlane.f32.xlu0 %v1425
    %v1606 = vpop.xlane.xlu0 %1605
    %1607 = vadd.xlane.f32.xlu0 %v1426
    %v1608 = vpop.xlane.xlu0 %1607
    %1609 = vadd.xlane.f32.xlu0 %v1427
    %v1610 = vpop.xlane.xlu0 %1609
    %1611 = vadd.xlane.f32.xlu0 %v1428
    %v1612 = vpop.xlane.xlu0 %1611
    %1613 = vadd.xlane.f32.xlu0 %v1429
    %v1614 = vpop.xlane.xlu0 %1613
    %1615 = vadd.xlane.f32.xlu0 %v1430
    %v1616 = vpop.xlane.xlu0 %1615
    %1617 = vadd.xlane.f32.xlu0 %v1431
    %v1618 = vpop.xlane.xlu0 %1617
    %1619 = vadd.xlane.f32.xlu0 %v1432
    %v1620 = vpop.xlane.xlu0 %1619
    %1621 = vadd.xlane.f32.xlu0 %v1433
    %v1622 = vpop.xlane.xlu0 %1621
    %1623 = vadd.xlane.f32.xlu0 %v1434
    %v1624 = vpop.xlane.xlu0 %1623
    %1625 = vadd.xlane.f32.xlu0 %v1435
    %v1626 = vpop.xlane.xlu0 %1625
    %1627 = vadd.xlane.f32.xlu0 %v1436
    %v1628 = vpop.xlane.xlu0 %1627
    %1629 = vadd.xlane.f32.xlu0 %v1437
    %v1630 = vpop.xlane.xlu0 %1629
    %1631 = vadd.xlane.f32.xlu0 %v1438
    %v1632 = vpop.xlane.xlu0 %1631
    %1633 = vadd.xlane.f32.xlu0 %v1439
    %v1634 = vpop.xlane.xlu0 %1633
    %1635 = vadd.xlane.f32.xlu0 %v1440
    %v1636 = vpop.xlane.xlu0 %1635
    %1637 = vadd.xlane.f32.xlu0 %v1441
    %v1638 = vpop.xlane.xlu0 %1637
    %1639 = vadd.xlane.f32.xlu0 %v1442
    %v1640 = vpop.xlane.xlu0 %1639
    %1641 = vadd.xlane.f32.xlu0 %v1443
    %v1642 = vpop.xlane.xlu0 %1641
    %1643 = vadd.xlane.f32.xlu0 %v1444
    %v1644 = vpop.xlane.xlu0 %1643
    %1645 = vadd.xlane.f32.xlu0 %v1445
    %v1646 = vpop.xlane.xlu0 %1645
    %1647 = vadd.xlane.f32.xlu0 %v1446
    %v1648 = vpop.xlane.xlu0 %1647
    %1649 = vadd.xlane.f32.xlu0 %v1447
    %v1650 = vpop.xlane.xlu0 %1649
    %1651 = vadd.xlane.f32.xlu0 %v1448
    %v1652 = vpop.xlane.xlu0 %1651
    %1653 = vadd.xlane.f32.xlu0 %v1449
    %v1654 = vpop.xlane.xlu0 %1653
    %1655 = vadd.xlane.f32.xlu0 %v1450
    %v1656 = vpop.xlane.xlu0 %1655
    %1657 = vadd.xlane.f32.xlu0 %v1451
    %v1658 = vpop.xlane.xlu0 %1657
    %1659 = vadd.xlane.f32.xlu0 %v1452
    %v1660 = vpop.xlane.xlu0 %1659
    %1661 = vadd.xlane.f32.xlu0 %v1453
    %v1662 = vpop.xlane.xlu0 %1661
    %1663 = vadd.xlane.f32.xlu0 %v1454
    %v1664 = vpop.xlane.xlu0 %1663
    %1665 = vadd.xlane.f32.xlu0 %v1455
    %v1666 = vpop.xlane.xlu0 %1665
    %1667 = vadd.xlane.f32.xlu0 %v1456
    %v1668 = vpop.xlane.xlu0 %1667
    %1669 = vadd.xlane.f32.xlu0 %v1457
    %v1670 = vpop.xlane.xlu0 %1669
    %1671 = vadd.xlane.f32.xlu0 %v1458
    %v1672 = vpop.xlane.xlu0 %1671
    %1673 = vadd.xlane.f32.xlu0 %v1459
    %v1674 = vpop.xlane.xlu0 %1673
    %1675 = vadd.xlane.f32.xlu0 %v1460
    %v1676 = vpop.xlane.xlu0 %1675
    %1677 = vadd.xlane.f32.xlu0 %v1461
    %v1678 = vpop.xlane.xlu0 %1677
    %1679 = vadd.xlane.f32.xlu0 %v1462
    %v1680 = vpop.xlane.xlu0 %1679
    %1681 = vadd.xlane.f32.xlu0 %v1463
    %v1682 = vpop.xlane.xlu0 %1681
    %1683 = vadd.xlane.f32.xlu0 %v1464
    %v1684 = vpop.xlane.xlu0 %1683
    %1685 = vadd.xlane.f32.xlu0 %v1465
    %v1686 = vpop.xlane.xlu0 %1685
    %1687 = vadd.xlane.f32.xlu0 %v1466
    %v1688 = vpop.xlane.xlu0 %1687
    %1689 = vadd.xlane.f32.xlu0 %v1467
    %v1690 = vpop.xlane.xlu0 %1689
    %1691 = vadd.xlane.f32.xlu0 %v1468
    %v1692 = vpop.xlane.xlu0 %1691
    %1693 = vadd.xlane.f32.xlu0 %v1469
    %v1694 = vpop.xlane.xlu0 %1693
    %1695 = vadd.xlane.f32.xlu0 %v1470
    %v1696 = vpop.xlane.xlu0 %1695
    %1697 = vadd.xlane.f32.xlu0 %v1471
    %v1698 = vpop.xlane.xlu0 %1697
    %1699 = vadd.xlane.f32.xlu0 %v1472
    %v1700 = vpop.xlane.xlu0 %1699
    %1701 = vadd.xlane.f32.xlu0 %v1473
    %v1702 = vpop.xlane.xlu0 %1701
    %1703 = vadd.xlane.f32.xlu0 %v1474
    %v1704 = vpop.xlane.xlu0 %1703
    %1705 = vadd.xlane.f32.xlu0 %v1475
    %v1706 = vpop.xlane.xlu0 %1705
    %1707 = vadd.xlane.f32.xlu0 %v1476
    %v1708 = vpop.xlane.xlu0 %1707
    %1709 = vadd.xlane.f32.xlu0 %v1477
    %v1710 = vpop.xlane.xlu0 %1709
    %1711 = vadd.xlane.f32.xlu0 %v1478
    %v1712 = vpop.xlane.xlu0 %1711
    %1713 = vadd.xlane.f32.xlu0 %v1479
    %v1714 = vpop.xlane.xlu0 %1713
    %1715 = vadd.xlane.f32.xlu0 %v1480
    %v1716 = vpop.xlane.xlu0 %1715
    %1717 = vadd.xlane.f32.xlu0 %v1481
    %v1718 = vpop.xlane.xlu0 %1717
    %1719 = vadd.xlane.f32.xlu0 %v1482
    %v1720 = vpop.xlane.xlu0 %1719
    %1721 = vadd.xlane.f32.xlu0 %v1483
    %v1722 = vpop.xlane.xlu0 %1721
    %1723 = vadd.xlane.f32.xlu0 %v1484
    %v1724 = vpop.xlane.xlu0 %1723
    %1725 = vadd.xlane.f32.xlu0 %v1485
    %v1726 = vpop.xlane.xlu0 %1725
    %1727 = vadd.xlane.f32.xlu0 %v1486
    %v1728 = vpop.xlane.xlu0 %1727
    %1729 = vadd.xlane.f32.xlu0 %v1487
    %v1730 = vpop.xlane.xlu0 %1729
    %1731 = vadd.xlane.f32.xlu0 %v1488
    %v1732 = vpop.xlane.xlu0 %1731
    %1733 = vadd.xlane.f32.xlu0 %v1489
    %v1734 = vpop.xlane.xlu0 %1733
    %1735 = vadd.xlane.f32.xlu0 %v1490
    %v1736 = vpop.xlane.xlu0 %1735
    %1737 = vadd.xlane.f32.xlu0 %v1491
    %v1738 = vpop.xlane.xlu0 %1737
    %1739 = vadd.xlane.f32.xlu0 %v1492
    %v1740 = vpop.xlane.xlu0 %1739
    %1741 = vadd.xlane.f32.xlu0 %v1493
    %v1742 = vpop.xlane.xlu0 %1741
    %1743 = vadd.xlane.f32.xlu0 %v1494
    %v1744 = vpop.xlane.xlu0 %1743
    %1745 = vadd.xlane.f32.xlu0 %v1495
    %v1746 = vpop.xlane.xlu0 %1745
    %1747 = vadd.xlane.f32.xlu0 %v1496
    %v1748 = vpop.xlane.xlu0 %1747
    %1749 = vadd.xlane.f32.xlu0 %v1497
    %v1750 = vpop.xlane.xlu0 %1749
    %1751 = vadd.xlane.f32.xlu0 %v1498
    %v1752 = vpop.xlane.xlu0 %1751
    %1753 = vadd.xlane.f32.xlu0 %v1499
    %v1754 = vpop.xlane.xlu0 %1753
    %1755 = vadd.xlane.f32.xlu0 %v1500
    %v1756 = vpop.xlane.xlu0 %1755
    %v1758 = vlaneseq
    %v1759 = vshrl.u32 %v1758, 7
    %v1760 = vsub.s32 0, %v1759
    %v1761 = vrot.slane %v221, %v1760
    %1762 = vset.pattern.permute.xlu0 0
    %1763 = vperm.xlu0 %1762, %v1761
    %v1764 = vpop.permute.xlu0 %1763
    %v1766 = vadd.f32 %v1502, %v1764
    %v1767 = vadd.f32 %v1504, %v1764
    %v1768 = vadd.f32 %v1506, %v1764
    %v1769 = vadd.f32 %v1508, %v1764
    %v1770 = vadd.f32 %v1510, %v1764
    %v1771 = vadd.f32 %v1512, %v1764
    %v1772 = vadd.f32 %v1514, %v1764
    %v1773 = vadd.f32 %v1516, %v1764
    %v1774 = vadd.f32 %v1518, %v1764
    %v1775 = vadd.f32 %v1520, %v1764
    %v1776 = vadd.f32 %v1522, %v1764
    %v1777 = vadd.f32 %v1524, %v1764
    %v1778 = vadd.f32 %v1526, %v1764
    %v1779 = vadd.f32 %v1528, %v1764
    %v1780 = vadd.f32 %v1530, %v1764
    %v1781 = vadd.f32 %v1532, %v1764
    %v1782 = vadd.f32 %v1534, %v1764
    %v1783 = vadd.f32 %v1536, %v1764
    %v1784 = vadd.f32 %v1538, %v1764
    %v1785 = vadd.f32 %v1540, %v1764
    %v1786 = vadd.f32 %v1542, %v1764
    %v1787 = vadd.f32 %v1544, %v1764
    %v1788 = vadd.f32 %v1546, %v1764
    %v1789 = vadd.f32 %v1548, %v1764
    %v1790 = vadd.f32 %v1550, %v1764
    %v1791 = vadd.f32 %v1552, %v1764
    %v1792 = vadd.f32 %v1554, %v1764
    %v1793 = vadd.f32 %v1556, %v1764
    %v1794 = vadd.f32 %v1558, %v1764
    %v1795 = vadd.f32 %v1560, %v1764
    %v1796 = vadd.f32 %v1562, %v1764
    %v1797 = vadd.f32 %v1564, %v1764
    %v1798 = vadd.f32 %v1566, %v1764
    %v1799 = vadd.f32 %v1568, %v1764
    %v1800 = vadd.f32 %v1570, %v1764
    %v1801 = vadd.f32 %v1572, %v1764
    %v1802 = vadd.f32 %v1574, %v1764
    %v1803 = vadd.f32 %v1576, %v1764
    %v1804 = vadd.f32 %v1578, %v1764
    %v1805 = vadd.f32 %v1580, %v1764
    %v1806 = vadd.f32 %v1582, %v1764
    %v1807 = vadd.f32 %v1584, %v1764
    %v1808 = vadd.f32 %v1586, %v1764
    %v1809 = vadd.f32 %v1588, %v1764
    %v1810 = vadd.f32 %v1590, %v1764
    %v1811 = vadd.f32 %v1592, %v1764
    %v1812 = vadd.f32 %v1594, %v1764
    %v1813 = vadd.f32 %v1596, %v1764
    %v1814 = vadd.f32 %v1598, %v1764
    %v1815 = vadd.f32 %v1600, %v1764
    %v1816 = vadd.f32 %v1602, %v1764
    %v1817 = vadd.f32 %v1604, %v1764
    %v1818 = vadd.f32 %v1606, %v1764
    %v1819 = vadd.f32 %v1608, %v1764
    %v1820 = vadd.f32 %v1610, %v1764
    %v1821 = vadd.f32 %v1612, %v1764
    %v1822 = vadd.f32 %v1614, %v1764
    %v1823 = vadd.f32 %v1616, %v1764
    %v1824 = vadd.f32 %v1618, %v1764
    %v1825 = vadd.f32 %v1620, %v1764
    %v1826 = vadd.f32 %v1622, %v1764
    %v1827 = vadd.f32 %v1624, %v1764
    %v1828 = vadd.f32 %v1626, %v1764
    %v1829 = vadd.f32 %v1628, %v1764
    %v1830 = vadd.f32 %v1630, %v1764
    %v1831 = vadd.f32 %v1632, %v1764
    %v1832 = vadd.f32 %v1634, %v1764
    %v1833 = vadd.f32 %v1636, %v1764
    %v1834 = vadd.f32 %v1638, %v1764
    %v1835 = vadd.f32 %v1640, %v1764
    %v1836 = vadd.f32 %v1642, %v1764
    %v1837 = vadd.f32 %v1644, %v1764
    %v1838 = vadd.f32 %v1646, %v1764
    %v1839 = vadd.f32 %v1648, %v1764
    %v1840 = vadd.f32 %v1650, %v1764
    %v1841 = vadd.f32 %v1652, %v1764
    %v1842 = vadd.f32 %v1654, %v1764
    %v1843 = vadd.f32 %v1656, %v1764
    %v1844 = vadd.f32 %v1658, %v1764
    %v1845 = vadd.f32 %v1660, %v1764
    %v1846 = vadd.f32 %v1662, %v1764
    %v1847 = vadd.f32 %v1664, %v1764
    %v1848 = vadd.f32 %v1666, %v1764
    %v1849 = vadd.f32 %v1668, %v1764
    %v1850 = vadd.f32 %v1670, %v1764
    %v1851 = vadd.f32 %v1672, %v1764
    %v1852 = vadd.f32 %v1674, %v1764
    %v1853 = vadd.f32 %v1676, %v1764
    %v1854 = vadd.f32 %v1678, %v1764
    %v1855 = vadd.f32 %v1680, %v1764
    %v1856 = vadd.f32 %v1682, %v1764
    %v1857 = vadd.f32 %v1684, %v1764
    %v1858 = vadd.f32 %v1686, %v1764
    %v1859 = vadd.f32 %v1688, %v1764
    %v1860 = vadd.f32 %v1690, %v1764
    %v1861 = vadd.f32 %v1692, %v1764
    %v1862 = vadd.f32 %v1694, %v1764
    %v1863 = vadd.f32 %v1696, %v1764
    %v1864 = vadd.f32 %v1698, %v1764
    %v1865 = vadd.f32 %v1700, %v1764
    %v1866 = vadd.f32 %v1702, %v1764
    %v1867 = vadd.f32 %v1704, %v1764
    %v1868 = vadd.f32 %v1706, %v1764
    %v1869 = vadd.f32 %v1708, %v1764
    %v1870 = vadd.f32 %v1710, %v1764
    %v1871 = vadd.f32 %v1712, %v1764
    %v1872 = vadd.f32 %v1714, %v1764
    %v1873 = vadd.f32 %v1716, %v1764
    %v1874 = vadd.f32 %v1718, %v1764
    %v1875 = vadd.f32 %v1720, %v1764
    %v1876 = vadd.f32 %v1722, %v1764
    %v1877 = vadd.f32 %v1724, %v1764
    %v1878 = vadd.f32 %v1726, %v1764
    %v1879 = vadd.f32 %v1728, %v1764
    %v1880 = vadd.f32 %v1730, %v1764
    %v1881 = vadd.f32 %v1732, %v1764
    %v1882 = vadd.f32 %v1734, %v1764
    %v1883 = vadd.f32 %v1736, %v1764
    %v1884 = vadd.f32 %v1738, %v1764
    %v1885 = vadd.f32 %v1740, %v1764
    %v1886 = vadd.f32 %v1742, %v1764
    %v1887 = vadd.f32 %v1744, %v1764
    %v1888 = vadd.f32 %v1746, %v1764
    %v1889 = vadd.f32 %v1748, %v1764
    %v1890 = vadd.f32 %v1750, %v1764
    %v1891 = vadd.f32 %v1752, %v1764
    %v1892 = vadd.f32 %v1754, %v1764
    %v1893 = vadd.f32 %v1756, %v1764
    %v2022 = vlaneseq
    %v2023 = vand.u32 %v2022, 127
    %v2024 = vlaneseq
    %v2025 = vshrl.u32 %v2024, 7
    %v2026 = vsub.s32 %v2023, %v2025
    %v2027 = vrot.slane %v1766, %v2026
    %v2028 = vadd.s32 %v2023, 4294967288
    %v2029 = vlaneseq
    %v2030 = vshrl.u32 %v2029, 7
    %v2031 = vsub.s32 %v2028, %v2030
    %v2032 = vrot.slane %v1767, %v2031
    %vm2033 = vcmask 130112
    %v2034 = vsel %vm2033, %v2032, %v2027
    %v2035 = vadd.s32 %v2023, 4294967280
    %v2036 = vlaneseq
    %v2037 = vshrl.u32 %v2036, 7
    %v2038 = vsub.s32 %v2035, %v2037
    %v2039 = vrot.slane %v1768, %v2038
    %vm2040 = vcmask 195712
    %v2041 = vsel %vm2040, %v2039, %v2034
    %v2042 = vadd.s32 %v2023, 4294967272
    %v2043 = vlaneseq
    %v2044 = vshrl.u32 %v2043, 7
    %v2045 = vsub.s32 %v2042, %v2044
    %v2046 = vrot.slane %v1769, %v2045
    %vm2047 = vcmask 261312
    %v2048 = vsel %vm2047, %v2046, %v2041
    %v2049 = vadd.s32 %v2023, 4294967264
    %v2050 = vlaneseq
    %v2051 = vshrl.u32 %v2050, 7
    %v2052 = vsub.s32 %v2049, %v2051
    %v2053 = vrot.slane %v1770, %v2052
    %vm2054 = vcmask 326912
    %v2055 = vsel %vm2054, %v2053, %v2048
    %v2056 = vadd.s32 %v2023, 4294967256
    %v2057 = vlaneseq
    %v2058 = vshrl.u32 %v2057, 7
    %v2059 = vsub.s32 %v2056, %v2058
    %v2060 = vrot.slane %v1771, %v2059
    %vm2061 = vcmask 392512
    %v2062 = vsel %vm2061, %v2060, %v2055
    %v2063 = vadd.s32 %v2023, 4294967248
    %v2064 = vlaneseq
    %v2065 = vshrl.u32 %v2064, 7
    %v2066 = vsub.s32 %v2063, %v2065
    %v2067 = vrot.slane %v1772, %v2066
    %vm2068 = vcmask 458112
    %v2069 = vsel %vm2068, %v2067, %v2062
    %v2070 = vadd.s32 %v2023, 4294967240
    %v2071 = vlaneseq
    %v2072 = vshrl.u32 %v2071, 7
    %v2073 = vsub.s32 %v2070, %v2072
    %v2074 = vrot.slane %v1773, %v2073
    %vm2075 = vcmask 523712
    %v2076 = vsel %vm2075, %v2074, %v2069
    %v2077 = vadd.s32 %v2023, 4294967232
    %v2078 = vlaneseq
    %v2079 = vshrl.u32 %v2078, 7
    %v2080 = vsub.s32 %v2077, %v2079
    %v2081 = vrot.slane %v1774, %v2080
    %vm2082 = vcmask 589312
    %v2083 = vsel %vm2082, %v2081, %v2076
    %v2084 = vadd.s32 %v2023, 4294967224
    %v2085 = vlaneseq
    %v2086 = vshrl.u32 %v2085, 7
    %v2087 = vsub.s32 %v2084, %v2086
    %v2088 = vrot.slane %v1775, %v2087
    %vm2089 = vcmask 654912
    %v2090 = vsel %vm2089, %v2088, %v2083
    %v2091 = vadd.s32 %v2023, 4294967216
    %v2092 = vlaneseq
    %v2093 = vshrl.u32 %v2092, 7
    %v2094 = vsub.s32 %v2091, %v2093
    %v2095 = vrot.slane %v1776, %v2094
    %vm2096 = vcmask 720512
    %v2097 = vsel %vm2096, %v2095, %v2090
    %v2098 = vadd.s32 %v2023, 4294967208
    %v2099 = vlaneseq
    %v2100 = vshrl.u32 %v2099, 7
    %v2101 = vsub.s32 %v2098, %v2100
    %v2102 = vrot.slane %v1777, %v2101
    %vm2103 = vcmask 786112
    %v2104 = vsel %vm2103, %v2102, %v2097
    %v2105 = vadd.s32 %v2023, 4294967200
    %v2106 = vlaneseq
    %v2107 = vshrl.u32 %v2106, 7
    %v2108 = vsub.s32 %v2105, %v2107
    %v2109 = vrot.slane %v1778, %v2108
    %vm2110 = vcmask 851712
    %v2111 = vsel %vm2110, %v2109, %v2104
    %v2112 = vadd.s32 %v2023, 4294967192
    %v2113 = vlaneseq
    %v2114 = vshrl.u32 %v2113, 7
    %v2115 = vsub.s32 %v2112, %v2114
    %v2116 = vrot.slane %v1779, %v2115
    %vm2117 = vcmask 917312
    %v2118 = vsel %vm2117, %v2116, %v2111
    %v2119 = vadd.s32 %v2023, 4294967184
    %v2120 = vlaneseq
    %v2121 = vshrl.u32 %v2120, 7
    %v2122 = vsub.s32 %v2119, %v2121
    %v2123 = vrot.slane %v1780, %v2122
    %vm2124 = vcmask 982912
    %v2125 = vsel %vm2124, %v2123, %v2118
    %v2126 = vadd.s32 %v2023, 4294967176
    %v2127 = vlaneseq
    %v2128 = vshrl.u32 %v2127, 7
    %v2129 = vsub.s32 %v2126, %v2128
    %v2130 = vrot.slane %v1781, %v2129
    %vm2131 = vcmask 1048512
    %v2132 = vsel %vm2131, %v2130, %v2125
    %v2133 = vlaneseq
    %v2134 = vshrl.u32 %v2133, 7
    %v2135 = vsub.s32 %v2023, %v2134
    %v2136 = vrot.slane %v1782, %v2135
    %v2137 = vlaneseq
    %v2138 = vshrl.u32 %v2137, 7
    %v2139 = vsub.s32 %v2028, %v2138
    %v2140 = vrot.slane %v1783, %v2139
    %v2141 = vsel %vm2033, %v2140, %v2136
    %v2142 = vlaneseq
    %v2143 = vshrl.u32 %v2142, 7
    %v2144 = vsub.s32 %v2035, %v2143
    %v2145 = vrot.slane %v1784, %v2144
    %v2146 = vsel %vm2040, %v2145, %v2141
    %v2147 = vlaneseq
    %v2148 = vshrl.u32 %v2147, 7
    %v2149 = vsub.s32 %v2042, %v2148
    %v2150 = vrot.slane %v1785, %v2149
    %v2151 = vsel %vm2047, %v2150, %v2146
    %v2152 = vlaneseq
    %v2153 = vshrl.u32 %v2152, 7
    %v2154 = vsub.s32 %v2049, %v2153
    %v2155 = vrot.slane %v1786, %v2154
    %v2156 = vsel %vm2054, %v2155, %v2151
    %v2157 = vlaneseq
    %v2158 = vshrl.u32 %v2157, 7
    %v2159 = vsub.s32 %v2056, %v2158
    %v2160 = vrot.slane %v1787, %v2159
    %v2161 = vsel %vm2061, %v2160, %v2156
    %v2162 = vlaneseq
    %v2163 = vshrl.u32 %v2162, 7
    %v2164 = vsub.s32 %v2063, %v2163
    %v2165 = vrot.slane %v1788, %v2164
    %v2166 = vsel %vm2068, %v2165, %v2161
    %v2167 = vlaneseq
    %v2168 = vshrl.u32 %v2167, 7
    %v2169 = vsub.s32 %v2070, %v2168
    %v2170 = vrot.slane %v1789, %v2169
    %v2171 = vsel %vm2075, %v2170, %v2166
    %v2172 = vlaneseq
    %v2173 = vshrl.u32 %v2172, 7
    %v2174 = vsub.s32 %v2077, %v2173
    %v2175 = vrot.slane %v1790, %v2174
    %v2176 = vsel %vm2082, %v2175, %v2171
    %v2177 = vlaneseq
    %v2178 = vshrl.u32 %v2177, 7
    %v2179 = vsub.s32 %v2084, %v2178
    %v2180 = vrot.slane %v1791, %v2179
    %v2181 = vsel %vm2089, %v2180, %v2176
    %v2182 = vlaneseq
    %v2183 = vshrl.u32 %v2182, 7
    %v2184 = vsub.s32 %v2091, %v2183
    %v2185 = vrot.slane %v1792, %v2184
    %v2186 = vsel %vm2096, %v2185, %v2181
    %v2187 = vlaneseq
    %v2188 = vshrl.u32 %v2187, 7
    %v2189 = vsub.s32 %v2098, %v2188
    %v2190 = vrot.slane %v1793, %v2189
    %v2191 = vsel %vm2103, %v2190, %v2186
    %v2192 = vlaneseq
    %v2193 = vshrl.u32 %v2192, 7
    %v2194 = vsub.s32 %v2105, %v2193
    %v2195 = vrot.slane %v1794, %v2194
    %v2196 = vsel %vm2110, %v2195, %v2191
    %v2197 = vlaneseq
    %v2198 = vshrl.u32 %v2197, 7
    %v2199 = vsub.s32 %v2112, %v2198
    %v2200 = vrot.slane %v1795, %v2199
    %v2201 = vsel %vm2117, %v2200, %v2196
    %v2202 = vlaneseq
    %v2203 = vshrl.u32 %v2202, 7
    %v2204 = vsub.s32 %v2119, %v2203
    %v2205 = vrot.slane %v1796, %v2204
    %v2206 = vsel %vm2124, %v2205, %v2201
    %v2207 = vlaneseq
    %v2208 = vshrl.u32 %v2207, 7
    %v2209 = vsub.s32 %v2126, %v2208
    %v2210 = vrot.slane %v1797, %v2209
    %v2211 = vsel %vm2131, %v2210, %v2206
    %v2212 = vlaneseq
    %v2213 = vshrl.u32 %v2212, 7
    %v2214 = vsub.s32 %v2023, %v2213
    %v2215 = vrot.slane %v1798, %v2214
    %v2216 = vlaneseq
    %v2217 = vshrl.u32 %v2216, 7
    %v2218 = vsub.s32 %v2028, %v2217
    %v2219 = vrot.slane %v1799, %v2218
    %v2220 = vsel %vm2033, %v2219, %v2215
    %v2221 = vlaneseq
    %v2222 = vshrl.u32 %v2221, 7
    %v2223 = vsub.s32 %v2035, %v2222
    %v2224 = vrot.slane %v1800, %v2223
    %v2225 = vsel %vm2040, %v2224, %v2220
    %v2226 = vlaneseq
    %v2227 = vshrl.u32 %v2226, 7
    %v2228 = vsub.s32 %v2042, %v2227
    %v2229 = vrot.slane %v1801, %v2228
    %v2230 = vsel %vm2047, %v2229, %v2225
    %v2231 = vlaneseq
    %v2232 = vshrl.u32 %v2231, 7
    %v2233 = vsub.s32 %v2049, %v2232
    %v2234 = vrot.slane %v1802, %v2233
    %v2235 = vsel %vm2054, %v2234, %v2230
    %v2236 = vlaneseq
    %v2237 = vshrl.u32 %v2236, 7
    %v2238 = vsub.s32 %v2056, %v2237
    %v2239 = vrot.slane %v1803, %v2238
    %v2240 = vsel %vm2061, %v2239, %v2235
    %v2241 = vlaneseq
    %v2242 = vshrl.u32 %v2241, 7
    %v2243 = vsub.s32 %v2063, %v2242
    %v2244 = vrot.slane %v1804, %v2243
    %v2245 = vsel %vm2068, %v2244, %v2240
    %v2246 = vlaneseq
    %v2247 = vshrl.u32 %v2246, 7
    %v2248 = vsub.s32 %v2070, %v2247
    %v2249 = vrot.slane %v1805, %v2248
    %v2250 = vsel %vm2075, %v2249, %v2245
    %v2251 = vlaneseq
    %v2252 = vshrl.u32 %v2251, 7
    %v2253 = vsub.s32 %v2077, %v2252
    %v2254 = vrot.slane %v1806, %v2253
    %v2255 = vsel %vm2082, %v2254, %v2250
    %v2256 = vlaneseq
    %v2257 = vshrl.u32 %v2256, 7
    %v2258 = vsub.s32 %v2084, %v2257
    %v2259 = vrot.slane %v1807, %v2258
    %v2260 = vsel %vm2089, %v2259, %v2255
    %v2261 = vlaneseq
    %v2262 = vshrl.u32 %v2261, 7
    %v2263 = vsub.s32 %v2091, %v2262
    %v2264 = vrot.slane %v1808, %v2263
    %v2265 = vsel %vm2096, %v2264, %v2260
    %v2266 = vlaneseq
    %v2267 = vshrl.u32 %v2266, 7
    %v2268 = vsub.s32 %v2098, %v2267
    %v2269 = vrot.slane %v1809, %v2268
    %v2270 = vsel %vm2103, %v2269, %v2265
    %v2271 = vlaneseq
    %v2272 = vshrl.u32 %v2271, 7
    %v2273 = vsub.s32 %v2105, %v2272
    %v2274 = vrot.slane %v1810, %v2273
    %v2275 = vsel %vm2110, %v2274, %v2270
    %v2276 = vlaneseq
    %v2277 = vshrl.u32 %v2276, 7
    %v2278 = vsub.s32 %v2112, %v2277
    %v2279 = vrot.slane %v1811, %v2278
    %v2280 = vsel %vm2117, %v2279, %v2275
    %v2281 = vlaneseq
    %v2282 = vshrl.u32 %v2281, 7
    %v2283 = vsub.s32 %v2119, %v2282
    %v2284 = vrot.slane %v1812, %v2283
    %v2285 = vsel %vm2124, %v2284, %v2280
    %v2286 = vlaneseq
    %v2287 = vshrl.u32 %v2286, 7
    %v2288 = vsub.s32 %v2126, %v2287
    %v2289 = vrot.slane %v1813, %v2288
    %v2290 = vsel %vm2131, %v2289, %v2285
    %v2291 = vlaneseq
    %v2292 = vshrl.u32 %v2291, 7
    %v2293 = vsub.s32 %v2023, %v2292
    %v2294 = vrot.slane %v1814, %v2293
    %v2295 = vlaneseq
    %v2296 = vshrl.u32 %v2295, 7
    %v2297 = vsub.s32 %v2028, %v2296
    %v2298 = vrot.slane %v1815, %v2297
    %v2299 = vsel %vm2033, %v2298, %v2294
    %v2300 = vlaneseq
    %v2301 = vshrl.u32 %v2300, 7
    %v2302 = vsub.s32 %v2035, %v2301
    %v2303 = vrot.slane %v1816, %v2302
    %v2304 = vsel %vm2040, %v2303, %v2299
    %v2305 = vlaneseq
    %v2306 = vshrl.u32 %v2305, 7
    %v2307 = vsub.s32 %v2042, %v2306
    %v2308 = vrot.slane %v1817, %v2307
    %v2309 = vsel %vm2047, %v2308, %v2304
    %v2310 = vlaneseq
    %v2311 = vshrl.u32 %v2310, 7
    %v2312 = vsub.s32 %v2049, %v2311
    %v2313 = vrot.slane %v1818, %v2312
    %v2314 = vsel %vm2054, %v2313, %v2309
    %v2315 = vlaneseq
    %v2316 = vshrl.u32 %v2315, 7
    %v2317 = vsub.s32 %v2056, %v2316
    %v2318 = vrot.slane %v1819, %v2317
    %v2319 = vsel %vm2061, %v2318, %v2314
    %v2320 = vlaneseq
    %v2321 = vshrl.u32 %v2320, 7
    %v2322 = vsub.s32 %v2063, %v2321
    %v2323 = vrot.slane %v1820, %v2322
    %v2324 = vsel %vm2068, %v2323, %v2319
    %v2325 = vlaneseq
    %v2326 = vshrl.u32 %v2325, 7
    %v2327 = vsub.s32 %v2070, %v2326
    %v2328 = vrot.slane %v1821, %v2327
    %v2329 = vsel %vm2075, %v2328, %v2324
    %v2330 = vlaneseq
    %v2331 = vshrl.u32 %v2330, 7
    %v2332 = vsub.s32 %v2077, %v2331
    %v2333 = vrot.slane %v1822, %v2332
    %v2334 = vsel %vm2082, %v2333, %v2329
    %v2335 = vlaneseq
    %v2336 = vshrl.u32 %v2335, 7
    %v2337 = vsub.s32 %v2084, %v2336
    %v2338 = vrot.slane %v1823, %v2337
    %v2339 = vsel %vm2089, %v2338, %v2334
    %v2340 = vlaneseq
    %v2341 = vshrl.u32 %v2340, 7
    %v2342 = vsub.s32 %v2091, %v2341
    %v2343 = vrot.slane %v1824, %v2342
    %v2344 = vsel %vm2096, %v2343, %v2339
    %v2345 = vlaneseq
    %v2346 = vshrl.u32 %v2345, 7
    %v2347 = vsub.s32 %v2098, %v2346
    %v2348 = vrot.slane %v1825, %v2347
    %v2349 = vsel %vm2103, %v2348, %v2344
    %v2350 = vlaneseq
    %v2351 = vshrl.u32 %v2350, 7
    %v2352 = vsub.s32 %v2105, %v2351
    %v2353 = vrot.slane %v1826, %v2352
    %v2354 = vsel %vm2110, %v2353, %v2349
    %v2355 = vlaneseq
    %v2356 = vshrl.u32 %v2355, 7
    %v2357 = vsub.s32 %v2112, %v2356
    %v2358 = vrot.slane %v1827, %v2357
    %v2359 = vsel %vm2117, %v2358, %v2354
    %v2360 = vlaneseq
    %v2361 = vshrl.u32 %v2360, 7
    %v2362 = vsub.s32 %v2119, %v2361
    %v2363 = vrot.slane %v1828, %v2362
    %v2364 = vsel %vm2124, %v2363, %v2359
    %v2365 = vlaneseq
    %v2366 = vshrl.u32 %v2365, 7
    %v2367 = vsub.s32 %v2126, %v2366
    %v2368 = vrot.slane %v1829, %v2367
    %v2369 = vsel %vm2131, %v2368, %v2364
    %v2370 = vlaneseq
    %v2371 = vshrl.u32 %v2370, 7
    %v2372 = vsub.s32 %v2023, %v2371
    %v2373 = vrot.slane %v1830, %v2372
    %v2374 = vlaneseq
    %v2375 = vshrl.u32 %v2374, 7
    %v2376 = vsub.s32 %v2028, %v2375
    %v2377 = vrot.slane %v1831, %v2376
    %v2378 = vsel %vm2033, %v2377, %v2373
    %v2379 = vlaneseq
    %v2380 = vshrl.u32 %v2379, 7
    %v2381 = vsub.s32 %v2035, %v2380
    %v2382 = vrot.slane %v1832, %v2381
    %v2383 = vsel %vm2040, %v2382, %v2378
    %v2384 = vlaneseq
    %v2385 = vshrl.u32 %v2384, 7
    %v2386 = vsub.s32 %v2042, %v2385
    %v2387 = vrot.slane %v1833, %v2386
    %v2388 = vsel %vm2047, %v2387, %v2383
    %v2389 = vlaneseq
    %v2390 = vshrl.u32 %v2389, 7
    %v2391 = vsub.s32 %v2049, %v2390
    %v2392 = vrot.slane %v1834, %v2391
    %v2393 = vsel %vm2054, %v2392, %v2388
    %v2394 = vlaneseq
    %v2395 = vshrl.u32 %v2394, 7
    %v2396 = vsub.s32 %v2056, %v2395
    %v2397 = vrot.slane %v1835, %v2396
    %v2398 = vsel %vm2061, %v2397, %v2393
    %v2399 = vlaneseq
    %v2400 = vshrl.u32 %v2399, 7
    %v2401 = vsub.s32 %v2063, %v2400
    %v2402 = vrot.slane %v1836, %v2401
    %v2403 = vsel %vm2068, %v2402, %v2398
    %v2404 = vlaneseq
    %v2405 = vshrl.u32 %v2404, 7
    %v2406 = vsub.s32 %v2070, %v2405
    %v2407 = vrot.slane %v1837, %v2406
    %v2408 = vsel %vm2075, %v2407, %v2403
    %v2409 = vlaneseq
    %v2410 = vshrl.u32 %v2409, 7
    %v2411 = vsub.s32 %v2077, %v2410
    %v2412 = vrot.slane %v1838, %v2411
    %v2413 = vsel %vm2082, %v2412, %v2408
    %v2414 = vlaneseq
    %v2415 = vshrl.u32 %v2414, 7
    %v2416 = vsub.s32 %v2084, %v2415
    %v2417 = vrot.slane %v1839, %v2416
    %v2418 = vsel %vm2089, %v2417, %v2413
    %v2419 = vlaneseq
    %v2420 = vshrl.u32 %v2419, 7
    %v2421 = vsub.s32 %v2091, %v2420
    %v2422 = vrot.slane %v1840, %v2421
    %v2423 = vsel %vm2096, %v2422, %v2418
    %v2424 = vlaneseq
    %v2425 = vshrl.u32 %v2424, 7
    %v2426 = vsub.s32 %v2098, %v2425
    %v2427 = vrot.slane %v1841, %v2426
    %v2428 = vsel %vm2103, %v2427, %v2423
    %v2429 = vlaneseq
    %v2430 = vshrl.u32 %v2429, 7
    %v2431 = vsub.s32 %v2105, %v2430
    %v2432 = vrot.slane %v1842, %v2431
    %v2433 = vsel %vm2110, %v2432, %v2428
    %v2434 = vlaneseq
    %v2435 = vshrl.u32 %v2434, 7
    %v2436 = vsub.s32 %v2112, %v2435
    %v2437 = vrot.slane %v1843, %v2436
    %v2438 = vsel %vm2117, %v2437, %v2433
    %v2439 = vlaneseq
    %v2440 = vshrl.u32 %v2439, 7
    %v2441 = vsub.s32 %v2119, %v2440
    %v2442 = vrot.slane %v1844, %v2441
    %v2443 = vsel %vm2124, %v2442, %v2438
    %v2444 = vlaneseq
    %v2445 = vshrl.u32 %v2444, 7
    %v2446 = vsub.s32 %v2126, %v2445
    %v2447 = vrot.slane %v1845, %v2446
    %v2448 = vsel %vm2131, %v2447, %v2443
    %v2449 = vlaneseq
    %v2450 = vshrl.u32 %v2449, 7
    %v2451 = vsub.s32 %v2023, %v2450
    %v2452 = vrot.slane %v1846, %v2451
    %v2453 = vlaneseq
    %v2454 = vshrl.u32 %v2453, 7
    %v2455 = vsub.s32 %v2028, %v2454
    %v2456 = vrot.slane %v1847, %v2455
    %v2457 = vsel %vm2033, %v2456, %v2452
    %v2458 = vlaneseq
    %v2459 = vshrl.u32 %v2458, 7
    %v2460 = vsub.s32 %v2035, %v2459
    %v2461 = vrot.slane %v1848, %v2460
    %v2462 = vsel %vm2040, %v2461, %v2457
    %v2463 = vlaneseq
    %v2464 = vshrl.u32 %v2463, 7
    %v2465 = vsub.s32 %v2042, %v2464
    %v2466 = vrot.slane %v1849, %v2465
    %v2467 = vsel %vm2047, %v2466, %v2462
    %v2468 = vlaneseq
    %v2469 = vshrl.u32 %v2468, 7
    %v2470 = vsub.s32 %v2049, %v2469
    %v2471 = vrot.slane %v1850, %v2470
    %v2472 = vsel %vm2054, %v2471, %v2467
    %v2473 = vlaneseq
    %v2474 = vshrl.u32 %v2473, 7
    %v2475 = vsub.s32 %v2056, %v2474
    %v2476 = vrot.slane %v1851, %v2475
    %v2477 = vsel %vm2061, %v2476, %v2472
    %v2478 = vlaneseq
    %v2479 = vshrl.u32 %v2478, 7
    %v2480 = vsub.s32 %v2063, %v2479
    %v2481 = vrot.slane %v1852, %v2480
    %v2482 = vsel %vm2068, %v2481, %v2477
    %v2483 = vlaneseq
    %v2484 = vshrl.u32 %v2483, 7
    %v2485 = vsub.s32 %v2070, %v2484
    %v2486 = vrot.slane %v1853, %v2485
    %v2487 = vsel %vm2075, %v2486, %v2482
    %v2488 = vlaneseq
    %v2489 = vshrl.u32 %v2488, 7
    %v2490 = vsub.s32 %v2077, %v2489
    %v2491 = vrot.slane %v1854, %v2490
    %v2492 = vsel %vm2082, %v2491, %v2487
    %v2493 = vlaneseq
    %v2494 = vshrl.u32 %v2493, 7
    %v2495 = vsub.s32 %v2084, %v2494
    %v2496 = vrot.slane %v1855, %v2495
    %v2497 = vsel %vm2089, %v2496, %v2492
    %v2498 = vlaneseq
    %v2499 = vshrl.u32 %v2498, 7
    %v2500 = vsub.s32 %v2091, %v2499
    %v2501 = vrot.slane %v1856, %v2500
    %v2502 = vsel %vm2096, %v2501, %v2497
    %v2503 = vlaneseq
    %v2504 = vshrl.u32 %v2503, 7
    %v2505 = vsub.s32 %v2098, %v2504
    %v2506 = vrot.slane %v1857, %v2505
    %v2507 = vsel %vm2103, %v2506, %v2502
    %v2508 = vlaneseq
    %v2509 = vshrl.u32 %v2508, 7
    %v2510 = vsub.s32 %v2105, %v2509
    %v2511 = vrot.slane %v1858, %v2510
    %v2512 = vsel %vm2110, %v2511, %v2507
    %v2513 = vlaneseq
    %v2514 = vshrl.u32 %v2513, 7
    %v2515 = vsub.s32 %v2112, %v2514
    %v2516 = vrot.slane %v1859, %v2515
    %v2517 = vsel %vm2117, %v2516, %v2512
    %v2518 = vlaneseq
    %v2519 = vshrl.u32 %v2518, 7
    %v2520 = vsub.s32 %v2119, %v2519
    %v2521 = vrot.slane %v1860, %v2520
    %v2522 = vsel %vm2124, %v2521, %v2517
    %v2523 = vlaneseq
    %v2524 = vshrl.u32 %v2523, 7
    %v2525 = vsub.s32 %v2126, %v2524
    %v2526 = vrot.slane %v1861, %v2525
    %v2527 = vsel %vm2131, %v2526, %v2522
    %v2528 = vlaneseq
    %v2529 = vshrl.u32 %v2528, 7
    %v2530 = vsub.s32 %v2023, %v2529
    %v2531 = vrot.slane %v1862, %v2530
    %v2532 = vlaneseq
    %v2533 = vshrl.u32 %v2532, 7
    %v2534 = vsub.s32 %v2028, %v2533
    %v2535 = vrot.slane %v1863, %v2534
    %v2536 = vsel %vm2033, %v2535, %v2531
    %v2537 = vlaneseq
    %v2538 = vshrl.u32 %v2537, 7
    %v2539 = vsub.s32 %v2035, %v2538
    %v2540 = vrot.slane %v1864, %v2539
    %v2541 = vsel %vm2040, %v2540, %v2536
    %v2542 = vlaneseq
    %v2543 = vshrl.u32 %v2542, 7
    %v2544 = vsub.s32 %v2042, %v2543
    %v2545 = vrot.slane %v1865, %v2544
    %v2546 = vsel %vm2047, %v2545, %v2541
    %v2547 = vlaneseq
    %v2548 = vshrl.u32 %v2547, 7
    %v2549 = vsub.s32 %v2049, %v2548
    %v2550 = vrot.slane %v1866, %v2549
    %v2551 = vsel %vm2054, %v2550, %v2546
    %v2552 = vlaneseq
    %v2553 = vshrl.u32 %v2552, 7
    %v2554 = vsub.s32 %v2056, %v2553
    %v2555 = vrot.slane %v1867, %v2554
    %v2556 = vsel %vm2061, %v2555, %v2551
    %v2557 = vlaneseq
    %v2558 = vshrl.u32 %v2557, 7
    %v2559 = vsub.s32 %v2063, %v2558
    %v2560 = vrot.slane %v1868, %v2559
    %v2561 = vsel %vm2068, %v2560, %v2556
    %v2562 = vlaneseq
    %v2563 = vshrl.u32 %v2562, 7
    %v2564 = vsub.s32 %v2070, %v2563
    %v2565 = vrot.slane %v1869, %v2564
    %v2566 = vsel %vm2075, %v2565, %v2561
    %v2567 = vlaneseq
    %v2568 = vshrl.u32 %v2567, 7
    %v2569 = vsub.s32 %v2077, %v2568
    %v2570 = vrot.slane %v1870, %v2569
    %v2571 = vsel %vm2082, %v2570, %v2566
    %v2572 = vlaneseq
    %v2573 = vshrl.u32 %v2572, 7
    %v2574 = vsub.s32 %v2084, %v2573
    %v2575 = vrot.slane %v1871, %v2574
    %v2576 = vsel %vm2089, %v2575, %v2571
    %v2577 = vlaneseq
    %v2578 = vshrl.u32 %v2577, 7
    %v2579 = vsub.s32 %v2091, %v2578
    %v2580 = vrot.slane %v1872, %v2579
    %v2581 = vsel %vm2096, %v2580, %v2576
    %v2582 = vlaneseq
    %v2583 = vshrl.u32 %v2582, 7
    %v2584 = vsub.s32 %v2098, %v2583
    %v2585 = vrot.slane %v1873, %v2584
    %v2586 = vsel %vm2103, %v2585, %v2581
    %v2587 = vlaneseq
    %v2588 = vshrl.u32 %v2587, 7
    %v2589 = vsub.s32 %v2105, %v2588
    %v2590 = vrot.slane %v1874, %v2589
    %v2591 = vsel %vm2110, %v2590, %v2586
    %v2592 = vlaneseq
    %v2593 = vshrl.u32 %v2592, 7
    %v2594 = vsub.s32 %v2112, %v2593
    %v2595 = vrot.slane %v1875, %v2594
    %v2596 = vsel %vm2117, %v2595, %v2591
    %v2597 = vlaneseq
    %v2598 = vshrl.u32 %v2597, 7
    %v2599 = vsub.s32 %v2119, %v2598
    %v2600 = vrot.slane %v1876, %v2599
    %v2601 = vsel %vm2124, %v2600, %v2596
    %v2602 = vlaneseq
    %v2603 = vshrl.u32 %v2602, 7
    %v2604 = vsub.s32 %v2126, %v2603
    %v2605 = vrot.slane %v1877, %v2604
    %v2606 = vsel %vm2131, %v2605, %v2601
    %v2607 = vlaneseq
    %v2608 = vshrl.u32 %v2607, 7
    %v2609 = vsub.s32 %v2023, %v2608
    %v2610 = vrot.slane %v1878, %v2609
    %v2611 = vlaneseq
    %v2612 = vshrl.u32 %v2611, 7
    %v2613 = vsub.s32 %v2028, %v2612
    %v2614 = vrot.slane %v1879, %v2613
    %v2615 = vsel %vm2033, %v2614, %v2610
    %v2616 = vlaneseq
    %v2617 = vshrl.u32 %v2616, 7
    %v2618 = vsub.s32 %v2035, %v2617
    %v2619 = vrot.slane %v1880, %v2618
    %v2620 = vsel %vm2040, %v2619, %v2615
    %v2621 = vlaneseq
    %v2622 = vshrl.u32 %v2621, 7
    %v2623 = vsub.s32 %v2042, %v2622
    %v2624 = vrot.slane %v1881, %v2623
    %v2625 = vsel %vm2047, %v2624, %v2620
    %v2626 = vlaneseq
    %v2627 = vshrl.u32 %v2626, 7
    %v2628 = vsub.s32 %v2049, %v2627
    %v2629 = vrot.slane %v1882, %v2628
    %v2630 = vsel %vm2054, %v2629, %v2625
    %v2631 = vlaneseq
    %v2632 = vshrl.u32 %v2631, 7
    %v2633 = vsub.s32 %v2056, %v2632
    %v2634 = vrot.slane %v1883, %v2633
    %v2635 = vsel %vm2061, %v2634, %v2630
    %v2636 = vlaneseq
    %v2637 = vshrl.u32 %v2636, 7
    %v2638 = vsub.s32 %v2063, %v2637
    %v2639 = vrot.slane %v1884, %v2638
    %v2640 = vsel %vm2068, %v2639, %v2635
    %v2641 = vlaneseq
    %v2642 = vshrl.u32 %v2641, 7
    %v2643 = vsub.s32 %v2070, %v2642
    %v2644 = vrot.slane %v1885, %v2643
    %v2645 = vsel %vm2075, %v2644, %v2640
    %v2646 = vlaneseq
    %v2647 = vshrl.u32 %v2646, 7
    %v2648 = vsub.s32 %v2077, %v2647
    %v2649 = vrot.slane %v1886, %v2648
    %v2650 = vsel %vm2082, %v2649, %v2645
    %v2651 = vlaneseq
    %v2652 = vshrl.u32 %v2651, 7
    %v2653 = vsub.s32 %v2084, %v2652
    %v2654 = vrot.slane %v1887, %v2653
    %v2655 = vsel %vm2089, %v2654, %v2650
    %v2656 = vlaneseq
    %v2657 = vshrl.u32 %v2656, 7
    %v2658 = vsub.s32 %v2091, %v2657
    %v2659 = vrot.slane %v1888, %v2658
    %v2660 = vsel %vm2096, %v2659, %v2655
    %v2661 = vlaneseq
    %v2662 = vshrl.u32 %v2661, 7
    %v2663 = vsub.s32 %v2098, %v2662
    %v2664 = vrot.slane %v1889, %v2663
    %v2665 = vsel %vm2103, %v2664, %v2660
    %v2666 = vlaneseq
    %v2667 = vshrl.u32 %v2666, 7
    %v2668 = vsub.s32 %v2105, %v2667
    %v2669 = vrot.slane %v1890, %v2668
    %v2670 = vsel %vm2110, %v2669, %v2665
    %v2671 = vlaneseq
    %v2672 = vshrl.u32 %v2671, 7
    %v2673 = vsub.s32 %v2112, %v2672
    %v2674 = vrot.slane %v1891, %v2673
    %v2675 = vsel %vm2117, %v2674, %v2670
    %v2676 = vlaneseq
    %v2677 = vshrl.u32 %v2676, 7
    %v2678 = vsub.s32 %v2119, %v2677
    %v2679 = vrot.slane %v1892, %v2678
    %v2680 = vsel %vm2124, %v2679, %v2675
    %v2681 = vlaneseq
    %v2682 = vshrl.u32 %v2681, 7
    %v2683 = vsub.s32 %v2126, %v2682
    %v2684 = vrot.slane %v1893, %v2683
    %v2685 = vsel %vm2131, %v2684, %v2680
    %vm2686 = vcmask 1041409
    %v2687 = vsel %vm2686, %v2211, %v2132
    %vm2688 = vcmask 1042434
    %v2689 = vsel %vm2688, %v2290, %v2687
    %vm2690 = vcmask 1043459
    %v2691 = vsel %vm2690, %v2369, %v2689
    %vm2692 = vcmask 1044484
    %v2693 = vsel %vm2692, %v2448, %v2691
    %vm2694 = vcmask 1045509
    %v2695 = vsel %vm2694, %v2527, %v2693
    %vm2696 = vcmask 1046534
    %v2697 = vsel %vm2696, %v2606, %v2695
    %vm2698 = vcmask 1047559
    %v2699 = vsel %vm2698, %v2685, %v2697
    %2701 = vst [vmem:[#allocation9] sm:$0xff] %v2699
    %v2702 = vld [vmem:[#allocation9] sm:$0xff]
    %v2703 = vld [vmem:[%s2] sm:$0xff]
    %2704 = vset.pattern.permute.xlu0 0
    %2705 = vperm.xlu0 %2704, %v2703
    %v2706 = vpop.permute.xlu0 %2705
    %vm2707 = vcmp.lt.s32.totalorder %v2023, %v2706
    %v2708 = vsel %vm2707, %v2702, -1e+30
    %2709 = vmax.xlane.f32.xlu0 %v2708
    %v2710 = vpop.xlane.xlu0 %2709
    %v2711 = vsub.f32 %v2708, %v2710
    %v2712 = vmul.f32 %v2711, 1.442695
    %v2713 = vpow.pop %v2712
    %v2714 = vsel %vm2707, %v2713, 0.0
    %2715 = vadd.xlane.f32.xlu0 %v2714
    %v2716 = vpop.xlane.xlu0 %2715
    %vm2717 = vcmp.gt.f32.partialorder %v2716, 0.0
    %v2718 = vsel %vm2717, %v2716, 1.0
    %v2719 = vrcp.pop %v2718
    %v2720 = vmul.f32 %v2714, %v2719
    %2721 = vst [vmem:[#allocation9] sm:$0xff] %v2720
    // Predicated region
    $region46: #{tpu_custom_call.1} parent=1 // pred_check
      _
    $region47: #{tpu_custom_call.1} parent=1 // pred_check_branch
      %2723 = sbr.rel (0) target = $region49
    $region48: #{tpu_custom_call.1} parent=1 // pred_region
      %s2725 = ssub.s32 128, 128
      %2726 = vsyncadd [#allocation5], %s2725
      %s2728 = sshll.u32 [#allocation9], 4
      %s2729 = int_to_ptr.vmem [resolvable:$true] %s2728
      %2731 = dma.vmem_to_hbm [thread:$0]  %s2729, 128, %s8, [#allocation5]
    $region49: #{tpu_custom_call.1} parent=1 // pred_fallthru
      _
    // Predicated region
    $region50: #{tpu_custom_call.1} parent=1 // pred_check
      _
    $region51: #{tpu_custom_call.1} parent=1 // pred_check_branch
      %2733 = sbr.rel (0) target = $region53
    $region52: #{tpu_custom_call.1} parent=1 // pred_region
      %2734 = dma.done [#allocation5], 128
    $region53: #{tpu_custom_call.1} parent=1 // pred_fallthru
      _
    %2735 = vsyncpa [#allocation4], 1
    %2736 = vsyncpa [#allocation7], 1
    %2737 = vsyncpa [#allocation5], 1

</llo_original>
